<compile_context>
chip_gen: v6e
topology: v6e:2x2x1
jax: 0.10.0
libtpu: 0.0.40
codegen_flags: <defaults>
</compile_context>

<pallas_src>
import functools

import jax
import jax.numpy as jnp
from jax.experimental import pallas as pl
from jax.experimental.pallas import tpu as pltpu


def _round_up(v, m):
    return ((v + m - 1) // m) * m


def _lstm_classifier_kernel(num_layers, seq_len, hidden_size, matmul_dtype, *refs):
    """refs = [x, (wih, whh, bias) * L, wc, bc, out, h_scr, gx_scr]."""
    x_ref = refs[0]                       # (B, seq, in)  batch-major block
    idx = 1
    layer_params = []
    for _ in range(num_layers):
        layer_params.append((refs[idx], refs[idx + 1], refs[idx + 2]))
        idx += 3
    wc_ref = refs[idx]
    bc_ref = refs[idx + 1]
    out_ref = refs[idx + 2]
    h_scr = refs[idx + 3]                 # (seq, B, H)   f32 — hidden-state history
    gx_scr = refs[idx + 4]                # (seq, B, 4H)  f32 — hoisted input projection

    H = hidden_size
    G = 4 * H
    B = x_ref.shape[0]
    # Sub-vreg gate slices (H < 128): do the EUP work full-width, slice afterwards.
    full_width_act = H < 128

    h_last = None
    for layer, (wih_ref, whh_ref, b_ref) in enumerate(layer_params):
        is_last_layer = layer == num_layers - 1
        wih = wih_ref[...]                # (in_dim, 4H)  already matmul_dtype (pre-cast)
        whh = whh_ref[...]                # (H, 4H)       already matmul_dtype (pre-cast)
        b = b_ref[...]                    # (1, 4H)       f32 == b_ih + b_hh

        # Hoisted input projection for ALL timesteps: one (seq*B, in_dim) @ (in_dim, 4H)
        # matmul with the bias fused.  Only h @ whh remains on the serial critical path.
        if layer == 0:
            in_dim = x_ref.shape[2]
            x_flat = x_ref[...].reshape(B * seq_len, in_dim).astype(matmul_dtype)
            gx = jnp.dot(x_flat, wih, preferred_element_type=jnp.float32) + b
            # Reorder batch-major rows -> time-major once, in VMEM (lane dim stays minor).
            # This replaces the old wrapper-side HBM-level transpose of x.
            gx_scr[...] = jnp.transpose(gx.reshape(B, seq_len, G), (1, 0, 2))
        else:
            x_flat = h_scr[...].reshape(seq_len * B, H).astype(matmul_dtype)
            gx = jnp.dot(x_flat, wih, preferred_element_type=jnp.float32) + b
            gx_scr[...] = gx.reshape(seq_len, B, G)

        def step(t, carry):
            h, c = carry
            gates = gx_scr[t] + jnp.dot(h.astype(matmul_dtype), whh,
                                        preferred_element_type=jnp.float32)   # (B, 4H)
            if full_width_act:
                sig = jax.nn.sigmoid(gates)      # one full-width EUP push over all 4 gates
                th = jnp.tanh(gates)             # one full-width EUP push
                i_g = sig[:, 0 * H:1 * H]
                f_g = sig[:, 1 * H:2 * H]
                g_g = th[:, 2 * H:3 * H]
                o_g = sig[:, 3 * H:4 * H]
            else:
                i_g = jax.nn.sigmoid(gates[:, 0 * H:1 * H])
                f_g = jax.nn.sigmoid(gates[:, 1 * H:2 * H])
                g_g = jnp.tanh(gates[:, 2 * H:3 * H])
                o_g = jax.nn.sigmoid(gates[:, 3 * H:4 * H])
            c = f_g * c + i_g * g_g
            h = o_g * jnp.tanh(c)
            if not is_last_layer:
                h_scr[t] = h                     # feeds next layer; last layer needs only h
            return (h, c)

        h0 = jnp.zeros((B, H), jnp.float32)
        c0 = jnp.zeros((B, H), jnp.float32)
        # Bounded unroll: LLO scheduling visibility without vreg-spill risk at long seq_len.
        h_last, _ = jax.lax.fori_loop(0, seq_len, step, (h0, c0),
                                      unroll=min(8, seq_len))
        # TODO(synk): inter-layer dropout (p=0.5) skipped — eval-mode inference semantics.
        # TODO(synk): at production H, pin whh in MXU weight regs (matmul_push_rhs/acc_lhs)
        #             and stream layer l+1 weights via manual double-buffered DMA.

    # Classifier on the last timestep's hidden state; output tile is lane-dense (B, 128).
    logits = jnp.dot(h_last.astype(matmul_dtype), wc_ref[...],
                     preferred_element_type=jnp.float32) + bc_ref[...]
    out_ref[...] = logits.astype(out_ref.dtype)


def prepare_kernel_params(params, hidden_size, num_classes, *,
                          matmul_dtype=jnp.bfloat16, lanes=128):
    """One-time layout transform: transpose weights, pre-cast to the MXU operand dtype,
    fuse the two LSTM biases, lane-pad the classifier.  Biases stay f32 (added post-acc)."""
    c_pad = _round_up(num_classes, lanes)
    layers = []
    for (w_ih, w_hh, b_ih, b_hh) in params["layers"]:
        layers.append((
            jnp.transpose(w_ih).astype(matmul_dtype),          # (in_dim, 4H)
            jnp.transpose(w_hh).astype(matmul_dtype),          # (H, 4H)
            (b_ih + b_hh).reshape(1, -1).astype(jnp.float32),  # (1, 4H)
        ))
    wc = jnp.pad(jnp.transpose(params["w_cls"]),
                 ((0, 0), (0, c_pad - num_classes))).astype(matmul_dtype)       # (H, C_pad)
    bc = jnp.pad(params["b_cls"].reshape(1, -1),
                 ((0, 0), (0, c_pad - num_classes))).astype(jnp.float32)        # (1, C_pad)
    return {"layers": layers, "w_cls": wc, "b_cls": bc, "c_pad": c_pad,
            "matmul_dtype": matmul_dtype}


def _pick_batch_tile(batch, matmul_dtype, sublanes=8):
    """Fill the MXU M-dim (256 rows bf16 / 128 f32) but keep grid length >= 2 when the batch
    allows it, so v7x's second TensorCore is not left idle.  Tile is always a power of two
    (hence a multiple of 8 sublanes) down to 8."""
    tile = 256 if matmul_dtype == jnp.bfloat16 else 128
    while tile > sublanes and _round_up(batch, tile) // tile < 2:
        tile //= 2
    return tile


def lstm_classifier_forward(x, kparams, hidden_size, num_classes, *, batch_tile=None):
    """x: (batch, seq_len, input_size) f32 -> logits (batch, num_classes) f32."""
    batch, seq_len, input_size = x.shape
    matmul_dtype = kparams["matmul_dtype"]
    c_pad = kparams["c_pad"]
    num_layers = len(kparams["layers"])

    if batch_tile is None:
        batch_tile = _pick_batch_tile(batch, matmul_dtype)
    b_pad = _round_up(batch, batch_tile)
    x_p = x if b_pad == batch else jnp.pad(x, ((0, b_pad - batch), (0, 0), (0, 0)))

    flat_inputs = [x_p]
    in_specs = [pl.BlockSpec((batch_tile, seq_len, input_size), lambda b: (b, 0, 0))]
    for (wih, whh, bias) in kparams["layers"]:
        flat_inputs += [wih, whh, bias]
        in_specs += [
            pl.BlockSpec(wih.shape, lambda b: (0, 0)),
            pl.BlockSpec(whh.shape, lambda b: (0, 0)),
            pl.BlockSpec(bias.shape, lambda b: (0, 0)),
        ]
    flat_inputs += [kparams["w_cls"], kparams["b_cls"]]
    in_specs += [
        pl.BlockSpec(kparams["w_cls"].shape, lambda b: (0, 0)),
        pl.BlockSpec(kparams["b_cls"].shape, lambda b: (0, 0)),
    ]

    scratch_shapes = [
        pltpu.VMEM((seq_len, batch_tile, hidden_size), jnp.float32),        # h history
        pltpu.VMEM((seq_len, batch_tile, 4 * hidden_size), jnp.float32),    # hoisted gate x-proj
    ]

    # Explicit VMEM budget (v7x has only 64 MiB per TensorCore; inputs are double-buffered).
    def nbytes(a):
        return int(a.size) * a.dtype.itemsize
    weight_bytes = sum(nbytes(t) for lp in kparams["layers"] for t in lp)
    weight_bytes += nbytes(kparams["w_cls"]) + nbytes(kparams["b_cls"])
    block_bytes = (batch_tile * seq_len * input_size + batch_tile * c_pad) * 4
    scratch_bytes = seq_len * batch_tile * hidden_size * 4 * 5
    est = 2 * (weight_bytes + block_bytes) + scratch_bytes
    vmem_limit = int(min(64 << 20, max(32 << 20, 2 * est)))

    kernel = functools.partial(_lstm_classifier_kernel,
                               num_layers, seq_len, hidden_size, matmul_dtype)

    out = pl.pallas_call(
        kernel,
        out_shape=jax.ShapeDtypeStruct((b_pad, c_pad), jnp.float32),
        grid_spec=pltpu.PrefetchScalarGridSpec(
            num_scalar_prefetch=0,
            grid=(b_pad // batch_tile,),
            in_specs=in_specs,
            out_specs=pl.BlockSpec((batch_tile, c_pad), lambda b: (b, 0)),
            scratch_shapes=scratch_shapes,
        ),
        compiler_params=pltpu.CompilerParams(
            dimension_semantics=("parallel",),
            vmem_limit_bytes=vmem_limit,
        ),
    )(*flat_inputs)

    return out[:batch, :num_classes]


def init_params(key, input_size, hidden_size, num_layers, num_classes):
    """Deterministic init matching PyTorch shapes: U(-1/sqrt(H), 1/sqrt(H))."""
    k = 1.0 / jnp.sqrt(jnp.float32(hidden_size))
    layers = []
    for layer in range(num_layers):
        in_dim = input_size if layer == 0 else hidden_size
        key, k1, k2, k3, k4 = jax.random.split(key, 5)
        w_ih = jax.random.uniform(k1, (4 * hidden_size, in_dim), jnp.float32, -k, k)
        w_hh = jax.random.uniform(k2, (4 * hidden_size, hidden_size), jnp.float32, -k, k)
        b_ih = jax.random.uniform(k3, (4 * hidden_size,), jnp.float32, -k, k)
        b_hh = jax.random.uniform(k4, (4 * hidden_size,), jnp.float32, -k, k)
        layers.append((w_ih, w_hh, b_ih, b_hh))
    key, k5, k6 = jax.random.split(key, 3)
    w_cls = jax.random.uniform(k5, (num_classes, hidden_size), jnp.float32, -k, k)
    b_cls = jax.random.uniform(k6, (num_classes,), jnp.float32, -k, k)
    return {"layers": layers, "w_cls": w_cls, "b_cls": b_cls}


def _reference_forward(x, params, hidden_size):
    """Pure-JAX reference (same math, PyTorch weight layout) for the correctness check."""
    H = hidden_size
    layer_in = x  # (batch, seq, in)
    for (w_ih, w_hh, b_ih, b_hh) in params["layers"]:
        b = b_ih + b_hh
        hs = []
        h = jnp.zeros((x.shape[0], H), jnp.float32)
        c = jnp.zeros((x.shape[0], H), jnp.float32)
        for t in range(layer_in.shape[1]):
            gates = layer_in[:, t, :] @ w_ih.T + h @ w_hh.T + b
            i_g = jax.nn.sigmoid(gates[:, 0 * H:1 * H])
            f_g = jax.nn.sigmoid(gates[:, 1 * H:2 * H])
            g_g = jnp.tanh(gates[:, 2 * H:3 * H])
            o_g = jax.nn.sigmoid(gates[:, 3 * H:4 * H])
            c = f_g * c + i_g * g_g
            h = o_g * jnp.tanh(c)
            hs.append(h)
        layer_in = jnp.stack(hs, axis=1)
    last = layer_in[:, -1, :]
    return last @ params["w_cls"].T + params["b_cls"]


if __name__ == "__main__":
    batch, seq_len = 2, 8
    input_size, hidden_size, num_layers, num_classes = 4, 32, 2, 3

    key = jax.random.PRNGKey(0)
    key, xk, pk = jax.random.split(key, 3)
    x = jax.random.normal(xk, (batch, seq_len, input_size), jnp.float32)
    params = init_params(pk, input_size, hidden_size, num_layers, num_classes)

    ref = _reference_forward(x, params, hidden_size)

    # Default path: bf16 MXU operands on every generation (weights pre-cast once);
    # gate/cell math and matmul accumulation stay f32.
    kp_bf16 = prepare_kernel_params(params, hidden_size, num_classes,
                                    matmul_dtype=jnp.bfloat16)
    logits = lstm_classifier_forward(x, kp_bf16, hidden_size, num_classes)
    logits = jax.block_until_ready(logits)
    assert logits.shape == (batch, num_classes)
    assert jnp.allclose(logits, ref, atol=5e-2, rtol=5e-2), "bf16 mismatch vs reference"

    # f32-operand path (tolerance not razor-tight: TPU f32 matmuls are internally multi-pass).
    kp_f32 = prepare_kernel_params(params, hidden_size, num_classes,
                                   matmul_dtype=jnp.float32)
    logits_f32 = lstm_classifier_forward(x, kp_f32, hidden_size, num_classes)
    logits_f32 = jax.block_until_ready(logits_f32)
    assert jnp.allclose(logits_f32, ref, atol=2e-3, rtol=2e-3), "f32 mismatch vs reference"

    # Slightly larger batch exercises the multi-tile grid (>= 2 programs => both v7x TCs fed).
    batch2 = 16
    key, xk2 = jax.random.split(key)
    x2 = jax.random.normal(xk2, (batch2, seq_len, input_size), jnp.float32)
    ref2 = _reference_forward(x2, params, hidden_size)
    logits2 = jax.block_until_ready(
        lstm_classifier_forward(x2, kp_bf16, hidden_size, num_classes))
    assert logits2.shape == (batch2, num_classes)
    assert jnp.allclose(logits2, ref2, atol=5e-2, rtol=5e-2), "bf16 batch=16 mismatch"

    print("KERNEL_OK")
</pallas_src>

<mosaic_0001>
module attributes {stable_mosaic.version = 11 : i64} {
  func.func @_lstm_classifier_kernel(%arg0: i32, %arg1: memref<8x8x4xf32, #tpu.memory_space<vmem>>, %arg2: memref<4x128xbf16, #tpu.memory_space<vmem>>, %arg3: memref<32x128xbf16, #tpu.memory_space<vmem>>, %arg4: memref<1x128xf32, #tpu.memory_space<vmem>>, %arg5: memref<32x128xbf16, #tpu.memory_space<vmem>>, %arg6: memref<32x128xbf16, #tpu.memory_space<vmem>>, %arg7: memref<1x128xf32, #tpu.memory_space<vmem>>, %arg8: memref<32x128xbf16, #tpu.memory_space<vmem>>, %arg9: memref<1x128xf32, #tpu.memory_space<vmem>>, %arg10: memref<8x128xf32, #tpu.memory_space<vmem>>, %arg11: memref<8x8x32xf32, #tpu.memory_space<vmem>>, %arg12: memref<8x8x128xf32, #tpu.memory_space<vmem>>) attributes {dimension_semantics = [#tpu.dimension_semantics<parallel>], iteration_bounds = array<i64: 1>, scalar_prefetch = 0 : i64, scratch_operands = 2 : i64, tpu.core_type = #tpu.core_type<tc>, window_params = [{transform_indices = @transform_0, window_bounds = array<i64: 8, 8, 4>}, {pipeline_mode = #tpu.pipeline_mode<synchronous>, transform_indices = @transform_1, window_bounds = array<i64: 4, 128>}, {pipeline_mode = #tpu.pipeline_mode<synchronous>, transform_indices = @transform_2, window_bounds = array<i64: 32, 128>}, {pipeline_mode = #tpu.pipeline_mode<synchronous>, transform_indices = @transform_3, window_bounds = array<i64: 1, 128>}, {pipeline_mode = #tpu.pipeline_mode<synchronous>, transform_indices = @transform_4, window_bounds = array<i64: 32, 128>}, {pipeline_mode = #tpu.pipeline_mode<synchronous>, transform_indices = @transform_5, window_bounds = array<i64: 32, 128>}, {pipeline_mode = #tpu.pipeline_mode<synchronous>, transform_indices = @transform_6, window_bounds = array<i64: 1, 128>}, {pipeline_mode = #tpu.pipeline_mode<synchronous>, transform_indices = @transform_7, window_bounds = array<i64: 32, 128>}, {pipeline_mode = #tpu.pipeline_mode<synchronous>, transform_indices = @transform_8, window_bounds = array<i64: 1, 128>}, {transform_indices = @transform_9, window_bounds = array<i64: 8, 128>}]} {
    %c0 = arith.constant 0 : index
    %c0_0 = arith.constant 0 : index
    %0 = vector.load %arg2[%c0, %c0_0] : memref<4x128xbf16, #tpu.memory_space<vmem>>, vector<4x128xbf16>
    %c0_1 = arith.constant 0 : index
    %c0_2 = arith.constant 0 : index
    %1 = vector.load %arg3[%c0_1, %c0_2] : memref<32x128xbf16, #tpu.memory_space<vmem>>, vector<32x128xbf16>
    %c0_3 = arith.constant 0 : index
    %c0_4 = arith.constant 0 : index
    %2 = vector.load %arg4[%c0_3, %c0_4] : memref<1x128xf32, #tpu.memory_space<vmem>>, vector<1x128xf32>
    %c0_5 = arith.constant 0 : index
    %c0_6 = arith.constant 0 : index
    %c0_7 = arith.constant 0 : index
    %3 = vector.load %arg1[%c0_5, %c0_6, %c0_7] : memref<8x8x4xf32, #tpu.memory_space<vmem>>, vector<8x8x4xf32>
    %4 = vector.shape_cast %3 : vector<8x8x4xf32> to vector<64x4xf32>
    %5 = arith.truncf %4 : vector<64x4xf32> to vector<64x4xbf16>
    %cst = arith.constant dense<0.000000e+00> : vector<64x128xf32>
    %6 = tpu.matmul %5, %0, %cst {dimension_numbers = #tpu.dot_dimension_numbers<[1], [0], [0], [1], [0, 0, 1, 1], [], []>} : vector<64x4xbf16>, vector<4x128xbf16>, vector<64x128xf32> -> vector<64x128xf32>
    %7 = vector.broadcast %2 : vector<1x128xf32> to vector<64x128xf32>
    %8 = arith.addf %6, %7 : vector<64x128xf32>
    %9 = vector.shape_cast %8 : vector<64x128xf32> to vector<8x8x128xf32>
    %10 = tpu.transpose %9, [1, 0, 2] : vector<8x8x128xf32> -> vector<8x8x128xf32>
    %c0_8 = arith.constant 0 : index
    %c0_9 = arith.constant 0 : index
    %c0_10 = arith.constant 0 : index
    %11 = vector.load %arg12[%c0_8, %c0_9, %c0_10] : memref<8x8x128xf32, #tpu.memory_space<vmem>>, vector<8x8x128xf32>
    tpu.vector_store %arg12[%c0_8, %c0_9, %c0_10], %10 {strides = array<i32>} : memref<8x8x128xf32, #tpu.memory_space<vmem>>, vector<8x8x128xf32>,
    %cst_11 = arith.constant 0.000000e+00 : f32
    %12 = vector.broadcast %cst_11 : f32 to vector<8x32xf32>
    %cst_12 = arith.constant 0.000000e+00 : f32
    %13 = vector.broadcast %cst_12 : f32 to vector<8x32xf32>
    %c0_i32 = arith.constant 0 : i32
    %14 = arith.index_cast %c0_i32 : i32 to index
    %c0_13 = arith.constant 0 : index
    %c0_14 = arith.constant 0 : index
    %15 = vector.load %arg12[%14, %c0_13, %c0_14] : memref<8x8x128xf32, #tpu.memory_space<vmem>>, vector<1x8x128xf32>
    %16 = vector.shape_cast %15 : vector<1x8x128xf32> to vector<8x128xf32>
    %17 = arith.truncf %12 : vector<8x32xf32> to vector<8x32xbf16>
    %cst_15 = arith.constant dense<0.000000e+00> : vector<8x128xf32>
    %18 = tpu.matmul %17, %1, %cst_15 {dimension_numbers = #tpu.dot_dimension_numbers<[1], [0], [0], [1], [0, 0, 1, 1], [], []>} : vector<8x32xbf16>, vector<32x128xbf16>, vector<8x128xf32> -> vector<8x128xf32>
    %19 = arith.addf %16, %18 : vector<8x128xf32>
    %20 = arith.negf %19 : vector<8x128xf32>
    %21 = math.exp %20 : vector<8x128xf32>
    %cst_16 = arith.constant 1.000000e+00 : f32
    %22 = vector.broadcast %cst_16 : f32 to vector<8x128xf32>
    %23 = arith.addf %22, %21 : vector<8x128xf32>
    %24 = arith.divf %22, %23 : vector<8x128xf32>
    %25 = math.tanh %19 : vector<8x128xf32>
    %26 = vector.extract_strided_slice %24 {offsets = [0, 0], sizes = [8, 32], strides = [1, 1]} : vector<8x128xf32> to vector<8x32xf32>
    %27 = vector.extract_strided_slice %24 {offsets = [0, 32], sizes = [8, 32], strides = [1, 1]} : vector<8x128xf32> to vector<8x32xf32>
    %28 = vector.extract_strided_slice %25 {offsets = [0, 64], sizes = [8, 32], strides = [1, 1]} : vector<8x128xf32> to vector<8x32xf32>
    %29 = vector.extract_strided_slice %24 {offsets = [0, 96], sizes = [8, 32], strides = [1, 1]} : vector<8x128xf32> to vector<8x32xf32>
    %30 = arith.mulf %27, %13 : vector<8x32xf32>
    %31 = arith.mulf %26, %28 : vector<8x32xf32>
    %32 = arith.addf %30, %31 : vector<8x32xf32>
    %33 = math.tanh %32 : vector<8x32xf32>
    %34 = arith.mulf %29, %33 : vector<8x32xf32>
    %35 = arith.index_cast %c0_i32 : i32 to index
    %c0_17 = arith.constant 0 : index
    %c0_18 = arith.constant 0 : index
    %36 = vector.load %arg11[%35, %c0_17, %c0_18] : memref<8x8x32xf32, #tpu.memory_space<vmem>>, vector<1x8x32xf32>
    %37 = vector.shape_cast %36 : vector<1x8x32xf32> to vector<8x32xf32>
    %38 = vector.shape_cast %34 : vector<8x32xf32> to vector<1x8x32xf32>
    tpu.vector_store %arg11[%35, %c0_17, %c0_18], %38 {strides = array<i32>} : memref<8x8x32xf32, #tpu.memory_space<vmem>>, vector<1x8x32xf32>,
    %c1_i32 = arith.constant 1 : i32
    %39 = arith.index_cast %c1_i32 : i32 to index
    %c0_19 = arith.constant 0 : index
    %c0_20 = arith.constant 0 : index
    %40 = vector.load %arg12[%39, %c0_19, %c0_20] : memref<8x8x128xf32, #tpu.memory_space<vmem>>, vector<1x8x128xf32>
    %41 = vector.shape_cast %40 : vector<1x8x128xf32> to vector<8x128xf32>
    %42 = arith.truncf %34 : vector<8x32xf32> to vector<8x32xbf16>
    %cst_21 = arith.constant dense<0.000000e+00> : vector<8x128xf32>
    %43 = tpu.matmul %42, %1, %cst_21 {dimension_numbers = #tpu.dot_dimension_numbers<[1], [0], [0], [1], [0, 0, 1, 1], [], []>} : vector<8x32xbf16>, vector<32x128xbf16>, vector<8x128xf32> -> vector<8x128xf32>
    %44 = arith.addf %41, %43 : vector<8x128xf32>
    %45 = arith.negf %44 : vector<8x128xf32>
    %46 = math.exp %45 : vector<8x128xf32>
    %cst_22 = arith.constant 1.000000e+00 : f32
    %47 = vector.broadcast %cst_22 : f32 to vector<8x128xf32>
    %48 = arith.addf %47, %46 : vector<8x128xf32>
    %49 = arith.divf %47, %48 : vector<8x128xf32>
    %50 = math.tanh %44 : vector<8x128xf32>
    %51 = vector.extract_strided_slice %49 {offsets = [0, 0], sizes = [8, 32], strides = [1, 1]} : vector<8x128xf32> to vector<8x32xf32>
    %52 = vector.extract_strided_slice %49 {offsets = [0, 32], sizes = [8, 32], strides = [1, 1]} : vector<8x128xf32> to vector<8x32xf32>
    %53 = vector.extract_strided_slice %50 {offsets = [0, 64], sizes = [8, 32], strides = [1, 1]} : vector<8x128xf32> to vector<8x32xf32>
    %54 = vector.extract_strided_slice %49 {offsets = [0, 96], sizes = [8, 32], strides = [1, 1]} : vector<8x128xf32> to vector<8x32xf32>
    %55 = arith.mulf %52, %32 : vector<8x32xf32>
    %56 = arith.mulf %51, %53 : vector<8x32xf32>
    %57 = arith.addf %55, %56 : vector<8x32xf32>
    %58 = math.tanh %57 : vector<8x32xf32>
    %59 = arith.mulf %54, %58 : vector<8x32xf32>
    %60 = arith.index_cast %c1_i32 : i32 to index
    %c0_23 = arith.constant 0 : index
    %c0_24 = arith.constant 0 : index
    %61 = vector.load %arg11[%60, %c0_23, %c0_24] : memref<8x8x32xf32, #tpu.memory_space<vmem>>, vector<1x8x32xf32>
    %62 = vector.shape_cast %61 : vector<1x8x32xf32> to vector<8x32xf32>
    %63 = vector.shape_cast %59 : vector<8x32xf32> to vector<1x8x32xf32>
    tpu.vector_store %arg11[%60, %c0_23, %c0_24], %63 {strides = array<i32>} : memref<8x8x32xf32, #tpu.memory_space<vmem>>, vector<1x8x32xf32>,
    %c2_i32 = arith.constant 2 : i32
    %64 = arith.index_cast %c2_i32 : i32 to index
    %c0_25 = arith.constant 0 : index
    %c0_26 = arith.constant 0 : index
    %65 = vector.load %arg12[%64, %c0_25, %c0_26] : memref<8x8x128xf32, #tpu.memory_space<vmem>>, vector<1x8x128xf32>
    %66 = vector.shape_cast %65 : vector<1x8x128xf32> to vector<8x128xf32>
    %67 = arith.truncf %59 : vector<8x32xf32> to vector<8x32xbf16>
    %cst_27 = arith.constant dense<0.000000e+00> : vector<8x128xf32>
    %68 = tpu.matmul %67, %1, %cst_27 {dimension_numbers = #tpu.dot_dimension_numbers<[1], [0], [0], [1], [0, 0, 1, 1], [], []>} : vector<8x32xbf16>, vector<32x128xbf16>, vector<8x128xf32> -> vector<8x128xf32>
    %69 = arith.addf %66, %68 : vector<8x128xf32>
    %70 = arith.negf %69 : vector<8x128xf32>
    %71 = math.exp %70 : vector<8x128xf32>
    %cst_28 = arith.constant 1.000000e+00 : f32
    %72 = vector.broadcast %cst_28 : f32 to vector<8x128xf32>
    %73 = arith.addf %72, %71 : vector<8x128xf32>
    %74 = arith.divf %72, %73 : vector<8x128xf32>
    %75 = math.tanh %69 : vector<8x128xf32>
    %76 = vector.extract_strided_slice %74 {offsets = [0, 0], sizes = [8, 32], strides = [1, 1]} : vector<8x128xf32> to vector<8x32xf32>
    %77 = vector.extract_strided_slice %74 {offsets = [0, 32], sizes = [8, 32], strides = [1, 1]} : vector<8x128xf32> to vector<8x32xf32>
    %78 = vector.extract_strided_slice %75 {offsets = [0, 64], sizes = [8, 32], strides = [1, 1]} : vector<8x128xf32> to vector<8x32xf32>
    %79 = vector.extract_strided_slice %74 {offsets = [0, 96], sizes = [8, 32], strides = [1, 1]} : vector<8x128xf32> to vector<8x32xf32>
    %80 = arith.mulf %77, %57 : vector<8x32xf32>
    %81 = arith.mulf %76, %78 : vector<8x32xf32>
    %82 = arith.addf %80, %81 : vector<8x32xf32>
    %83 = math.tanh %82 : vector<8x32xf32>
    %84 = arith.mulf %79, %83 : vector<8x32xf32>
    %85 = arith.index_cast %c2_i32 : i32 to index
    %c0_29 = arith.constant 0 : index
    %c0_30 = arith.constant 0 : index
    %86 = vector.load %arg11[%85, %c0_29, %c0_30] : memref<8x8x32xf32, #tpu.memory_space<vmem>>, vector<1x8x32xf32>
    %87 = vector.shape_cast %86 : vector<1x8x32xf32> to vector<8x32xf32>
    %88 = vector.shape_cast %84 : vector<8x32xf32> to vector<1x8x32xf32>
    tpu.vector_store %arg11[%85, %c0_29, %c0_30], %88 {strides = array<i32>} : memref<8x8x32xf32, #tpu.memory_space<vmem>>, vector<1x8x32xf32>,
    %c3_i32 = arith.constant 3 : i32
    %89 = arith.index_cast %c3_i32 : i32 to index
    %c0_31 = arith.constant 0 : index
    %c0_32 = arith.constant 0 : index
    %90 = vector.load %arg12[%89, %c0_31, %c0_32] : memref<8x8x128xf32, #tpu.memory_space<vmem>>, vector<1x8x128xf32>
    %91 = vector.shape_cast %90 : vector<1x8x128xf32> to vector<8x128xf32>
    %92 = arith.truncf %84 : vector<8x32xf32> to vector<8x32xbf16>
    %cst_33 = arith.constant dense<0.000000e+00> : vector<8x128xf32>
    %93 = tpu.matmul %92, %1, %cst_33 {dimension_numbers = #tpu.dot_dimension_numbers<[1], [0], [0], [1], [0, 0, 1, 1], [], []>} : vector<8x32xbf16>, vector<32x128xbf16>, vector<8x128xf32> -> vector<8x128xf32>
    %94 = arith.addf %91, %93 : vector<8x128xf32>
    %95 = arith.negf %94 : vector<8x128xf32>
    %96 = math.exp %95 : vector<8x128xf32>
    %cst_34 = arith.constant 1.000000e+00 : f32
    %97 = vector.broadcast %cst_34 : f32 to vector<8x128xf32>
    %98 = arith.addf %97, %96 : vector<8x128xf32>
    %99 = arith.divf %97, %98 : vector<8x128xf32>
    %100 = math.tanh %94 : vector<8x128xf32>
    %101 = vector.extract_strided_slice %99 {offsets = [0, 0], sizes = [8, 32], strides = [1, 1]} : vector<8x128xf32> to vector<8x32xf32>
    %102 = vector.extract_strided_slice %99 {offsets = [0, 32], sizes = [8, 32], strides = [1, 1]} : vector<8x128xf32> to vector<8x32xf32>
    %103 = vector.extract_strided_slice %100 {offsets = [0, 64], sizes = [8, 32], strides = [1, 1]} : vector<8x128xf32> to vector<8x32xf32>
    %104 = vector.extract_strided_slice %99 {offsets = [0, 96], sizes = [8, 32], strides = [1, 1]} : vector<8x128xf32> to vector<8x32xf32>
    %105 = arith.mulf %102, %82 : vector<8x32xf32>
    %106 = arith.mulf %101, %103 : vector<8x32xf32>
    %107 = arith.addf %105, %106 : vector<8x32xf32>
    %108 = math.tanh %107 : vector<8x32xf32>
    %109 = arith.mulf %104, %108 : vector<8x32xf32>
    %110 = arith.index_cast %c3_i32 : i32 to index
    %c0_35 = arith.constant 0 : index
    %c0_36 = arith.constant 0 : index
    %111 = vector.load %arg11[%110, %c0_35, %c0_36] : memref<8x8x32xf32, #tpu.memory_space<vmem>>, vector<1x8x32xf32>
    %112 = vector.shape_cast %111 : vector<1x8x32xf32> to vector<8x32xf32>
    %113 = vector.shape_cast %109 : vector<8x32xf32> to vector<1x8x32xf32>
    tpu.vector_store %arg11[%110, %c0_35, %c0_36], %113 {strides = array<i32>} : memref<8x8x32xf32, #tpu.memory_space<vmem>>, vector<1x8x32xf32>,
    %c4_i32 = arith.constant 4 : i32
    %114 = arith.index_cast %c4_i32 : i32 to index
    %c0_37 = arith.constant 0 : index
    %c0_38 = arith.constant 0 : index
    %115 = vector.load %arg12[%114, %c0_37, %c0_38] : memref<8x8x128xf32, #tpu.memory_space<vmem>>, vector<1x8x128xf32>
    %116 = vector.shape_cast %115 : vector<1x8x128xf32> to vector<8x128xf32>
    %117 = arith.truncf %109 : vector<8x32xf32> to vector<8x32xbf16>
    %cst_39 = arith.constant dense<0.000000e+00> : vector<8x128xf32>
    %118 = tpu.matmul %117, %1, %cst_39 {dimension_numbers = #tpu.dot_dimension_numbers<[1], [0], [0], [1], [0, 0, 1, 1], [], []>} : vector<8x32xbf16>, vector<32x128xbf16>, vector<8x128xf32> -> vector<8x128xf32>
    %119 = arith.addf %116, %118 : vector<8x128xf32>
    %120 = arith.negf %119 : vector<8x128xf32>
    %121 = math.exp %120 : vector<8x128xf32>
    %cst_40 = arith.constant 1.000000e+00 : f32
    %122 = vector.broadcast %cst_40 : f32 to vector<8x128xf32>
    %123 = arith.addf %122, %121 : vector<8x128xf32>
    %124 = arith.divf %122, %123 : vector<8x128xf32>
    %125 = math.tanh %119 : vector<8x128xf32>
    %126 = vector.extract_strided_slice %124 {offsets = [0, 0], sizes = [8, 32], strides = [1, 1]} : vector<8x128xf32> to vector<8x32xf32>
    %127 = vector.extract_strided_slice %124 {offsets = [0, 32], sizes = [8, 32], strides = [1, 1]} : vector<8x128xf32> to vector<8x32xf32>
    %128 = vector.extract_strided_slice %125 {offsets = [0, 64], sizes = [8, 32], strides = [1, 1]} : vector<8x128xf32> to vector<8x32xf32>
    %129 = vector.extract_strided_slice %124 {offsets = [0, 96], sizes = [8, 32], strides = [1, 1]} : vector<8x128xf32> to vector<8x32xf32>
    %130 = arith.mulf %127, %107 : vector<8x32xf32>
    %131 = arith.mulf %126, %128 : vector<8x32xf32>
    %132 = arith.addf %130, %131 : vector<8x32xf32>
    %133 = math.tanh %132 : vector<8x32xf32>
    %134 = arith.mulf %129, %133 : vector<8x32xf32>
    %135 = arith.index_cast %c4_i32 : i32 to index
    %c0_41 = arith.constant 0 : index
    %c0_42 = arith.constant 0 : index
    %136 = vector.load %arg11[%135, %c0_41, %c0_42] : memref<8x8x32xf32, #tpu.memory_space<vmem>>, vector<1x8x32xf32>
    %137 = vector.shape_cast %136 : vector<1x8x32xf32> to vector<8x32xf32>
    %138 = vector.shape_cast %134 : vector<8x32xf32> to vector<1x8x32xf32>
    tpu.vector_store %arg11[%135, %c0_41, %c0_42], %138 {strides = array<i32>} : memref<8x8x32xf32, #tpu.memory_space<vmem>>, vector<1x8x32xf32>,
    %c5_i32 = arith.constant 5 : i32
    %139 = arith.index_cast %c5_i32 : i32 to index
    %c0_43 = arith.constant 0 : index
    %c0_44 = arith.constant 0 : index
    %140 = vector.load %arg12[%139, %c0_43, %c0_44] : memref<8x8x128xf32, #tpu.memory_space<vmem>>, vector<1x8x128xf32>
    %141 = vector.shape_cast %140 : vector<1x8x128xf32> to vector<8x128xf32>
    %142 = arith.truncf %134 : vector<8x32xf32> to vector<8x32xbf16>
    %cst_45 = arith.constant dense<0.000000e+00> : vector<8x128xf32>
    %143 = tpu.matmul %142, %1, %cst_45 {dimension_numbers = #tpu.dot_dimension_numbers<[1], [0], [0], [1], [0, 0, 1, 1], [], []>} : vector<8x32xbf16>, vector<32x128xbf16>, vector<8x128xf32> -> vector<8x128xf32>
    %144 = arith.addf %141, %143 : vector<8x128xf32>
    %145 = arith.negf %144 : vector<8x128xf32>
    %146 = math.exp %145 : vector<8x128xf32>
    %cst_46 = arith.constant 1.000000e+00 : f32
    %147 = vector.broadcast %cst_46 : f32 to vector<8x128xf32>
    %148 = arith.addf %147, %146 : vector<8x128xf32>
    %149 = arith.divf %147, %148 : vector<8x128xf32>
    %150 = math.tanh %144 : vector<8x128xf32>
    %151 = vector.extract_strided_slice %149 {offsets = [0, 0], sizes = [8, 32], strides = [1, 1]} : vector<8x128xf32> to vector<8x32xf32>
    %152 = vector.extract_strided_slice %149 {offsets = [0, 32], sizes = [8, 32], strides = [1, 1]} : vector<8x128xf32> to vector<8x32xf32>
    %153 = vector.extract_strided_slice %150 {offsets = [0, 64], sizes = [8, 32], strides = [1, 1]} : vector<8x128xf32> to vector<8x32xf32>
    %154 = vector.extract_strided_slice %149 {offsets = [0, 96], sizes = [8, 32], strides = [1, 1]} : vector<8x128xf32> to vector<8x32xf32>
    %155 = arith.mulf %152, %132 : vector<8x32xf32>
    %156 = arith.mulf %151, %153 : vector<8x32xf32>
    %157 = arith.addf %155, %156 : vector<8x32xf32>
    %158 = math.tanh %157 : vector<8x32xf32>
    %159 = arith.mulf %154, %158 : vector<8x32xf32>
    %160 = arith.index_cast %c5_i32 : i32 to index
    %c0_47 = arith.constant 0 : index
    %c0_48 = arith.constant 0 : index
    %161 = vector.load %arg11[%160, %c0_47, %c0_48] : memref<8x8x32xf32, #tpu.memory_space<vmem>>, vector<1x8x32xf32>
    %162 = vector.shape_cast %161 : vector<1x8x32xf32> to vector<8x32xf32>
    %163 = vector.shape_cast %159 : vector<8x32xf32> to vector<1x8x32xf32>
    tpu.vector_store %arg11[%160, %c0_47, %c0_48], %163 {strides = array<i32>} : memref<8x8x32xf32, #tpu.memory_space<vmem>>, vector<1x8x32xf32>,
    %c6_i32 = arith.constant 6 : i32
    %164 = arith.index_cast %c6_i32 : i32 to index
    %c0_49 = arith.constant 0 : index
    %c0_50 = arith.constant 0 : index
    %165 = vector.load %arg12[%164, %c0_49, %c0_50] : memref<8x8x128xf32, #tpu.memory_space<vmem>>, vector<1x8x128xf32>
    %166 = vector.shape_cast %165 : vector<1x8x128xf32> to vector<8x128xf32>
    %167 = arith.truncf %159 : vector<8x32xf32> to vector<8x32xbf16>
    %cst_51 = arith.constant dense<0.000000e+00> : vector<8x128xf32>
    %168 = tpu.matmul %167, %1, %cst_51 {dimension_numbers = #tpu.dot_dimension_numbers<[1], [0], [0], [1], [0, 0, 1, 1], [], []>} : vector<8x32xbf16>, vector<32x128xbf16>, vector<8x128xf32> -> vector<8x128xf32>
    %169 = arith.addf %166, %168 : vector<8x128xf32>
    %170 = arith.negf %169 : vector<8x128xf32>
    %171 = math.exp %170 : vector<8x128xf32>
    %cst_52 = arith.constant 1.000000e+00 : f32
    %172 = vector.broadcast %cst_52 : f32 to vector<8x128xf32>
    %173 = arith.addf %172, %171 : vector<8x128xf32>
    %174 = arith.divf %172, %173 : vector<8x128xf32>
    %175 = math.tanh %169 : vector<8x128xf32>
    %176 = vector.extract_strided_slice %174 {offsets = [0, 0], sizes = [8, 32], strides = [1, 1]} : vector<8x128xf32> to vector<8x32xf32>
    %177 = vector.extract_strided_slice %174 {offsets = [0, 32], sizes = [8, 32], strides = [1, 1]} : vector<8x128xf32> to vector<8x32xf32>
    %178 = vector.extract_strided_slice %175 {offsets = [0, 64], sizes = [8, 32], strides = [1, 1]} : vector<8x128xf32> to vector<8x32xf32>
    %179 = vector.extract_strided_slice %174 {offsets = [0, 96], sizes = [8, 32], strides = [1, 1]} : vector<8x128xf32> to vector<8x32xf32>
    %180 = arith.mulf %177, %157 : vector<8x32xf32>
    %181 = arith.mulf %176, %178 : vector<8x32xf32>
    %182 = arith.addf %180, %181 : vector<8x32xf32>
    %183 = math.tanh %182 : vector<8x32xf32>
    %184 = arith.mulf %179, %183 : vector<8x32xf32>
    %185 = arith.index_cast %c6_i32 : i32 to index
    %c0_53 = arith.constant 0 : index
    %c0_54 = arith.constant 0 : index
    %186 = vector.load %arg11[%185, %c0_53, %c0_54] : memref<8x8x32xf32, #tpu.memory_space<vmem>>, vector<1x8x32xf32>
    %187 = vector.shape_cast %186 : vector<1x8x32xf32> to vector<8x32xf32>
    %188 = vector.shape_cast %184 : vector<8x32xf32> to vector<1x8x32xf32>
    tpu.vector_store %arg11[%185, %c0_53, %c0_54], %188 {strides = array<i32>} : memref<8x8x32xf32, #tpu.memory_space<vmem>>, vector<1x8x32xf32>,
    %c7_i32 = arith.constant 7 : i32
    %189 = arith.index_cast %c7_i32 : i32 to index
    %c0_55 = arith.constant 0 : index
    %c0_56 = arith.constant 0 : index
    %190 = vector.load %arg12[%189, %c0_55, %c0_56] : memref<8x8x128xf32, #tpu.memory_space<vmem>>, vector<1x8x128xf32>
    %191 = vector.shape_cast %190 : vector<1x8x128xf32> to vector<8x128xf32>
    %192 = arith.truncf %184 : vector<8x32xf32> to vector<8x32xbf16>
    %cst_57 = arith.constant dense<0.000000e+00> : vector<8x128xf32>
    %193 = tpu.matmul %192, %1, %cst_57 {dimension_numbers = #tpu.dot_dimension_numbers<[1], [0], [0], [1], [0, 0, 1, 1], [], []>} : vector<8x32xbf16>, vector<32x128xbf16>, vector<8x128xf32> -> vector<8x128xf32>
    %194 = arith.addf %191, %193 : vector<8x128xf32>
    %195 = arith.negf %194 : vector<8x128xf32>
    %196 = math.exp %195 : vector<8x128xf32>
    %cst_58 = arith.constant 1.000000e+00 : f32
    %197 = vector.broadcast %cst_58 : f32 to vector<8x128xf32>
    %198 = arith.addf %197, %196 : vector<8x128xf32>
    %199 = arith.divf %197, %198 : vector<8x128xf32>
    %200 = math.tanh %194 : vector<8x128xf32>
    %201 = vector.extract_strided_slice %199 {offsets = [0, 0], sizes = [8, 32], strides = [1, 1]} : vector<8x128xf32> to vector<8x32xf32>
    %202 = vector.extract_strided_slice %199 {offsets = [0, 32], sizes = [8, 32], strides = [1, 1]} : vector<8x128xf32> to vector<8x32xf32>
    %203 = vector.extract_strided_slice %200 {offsets = [0, 64], sizes = [8, 32], strides = [1, 1]} : vector<8x128xf32> to vector<8x32xf32>
    %204 = vector.extract_strided_slice %199 {offsets = [0, 96], sizes = [8, 32], strides = [1, 1]} : vector<8x128xf32> to vector<8x32xf32>
    %205 = arith.mulf %202, %182 : vector<8x32xf32>
    %206 = arith.mulf %201, %203 : vector<8x32xf32>
    %207 = arith.addf %205, %206 : vector<8x32xf32>
    %208 = math.tanh %207 : vector<8x32xf32>
    %209 = arith.mulf %204, %208 : vector<8x32xf32>
    %210 = arith.index_cast %c7_i32 : i32 to index
    %c0_59 = arith.constant 0 : index
    %c0_60 = arith.constant 0 : index
    %211 = vector.load %arg11[%210, %c0_59, %c0_60] : memref<8x8x32xf32, #tpu.memory_space<vmem>>, vector<1x8x32xf32>
    %212 = vector.shape_cast %211 : vector<1x8x32xf32> to vector<8x32xf32>
    %213 = vector.shape_cast %209 : vector<8x32xf32> to vector<1x8x32xf32>
    tpu.vector_store %arg11[%210, %c0_59, %c0_60], %213 {strides = array<i32>} : memref<8x8x32xf32, #tpu.memory_space<vmem>>, vector<1x8x32xf32>,
    %c8_i32 = arith.constant 8 : i32
    %c0_61 = arith.constant 0 : index
    %c0_62 = arith.constant 0 : index
    %214 = vector.load %arg5[%c0_61, %c0_62] : memref<32x128xbf16, #tpu.memory_space<vmem>>, vector<32x128xbf16>
    %c0_63 = arith.constant 0 : index
    %c0_64 = arith.constant 0 : index
    %215 = vector.load %arg6[%c0_63, %c0_64] : memref<32x128xbf16, #tpu.memory_space<vmem>>, vector<32x128xbf16>
    %c0_65 = arith.constant 0 : index
    %c0_66 = arith.constant 0 : index
    %216 = vector.load %arg7[%c0_65, %c0_66] : memref<1x128xf32, #tpu.memory_space<vmem>>, vector<1x128xf32>
    %c0_67 = arith.constant 0 : index
    %c0_68 = arith.constant 0 : index
    %c0_69 = arith.constant 0 : index
    %217 = vector.load %arg11[%c0_67, %c0_68, %c0_69] : memref<8x8x32xf32, #tpu.memory_space<vmem>>, vector<8x8x32xf32>
    %218 = vector.shape_cast %217 : vector<8x8x32xf32> to vector<64x32xf32>
    %219 = arith.truncf %218 : vector<64x32xf32> to vector<64x32xbf16>
    %cst_70 = arith.constant dense<0.000000e+00> : vector<64x128xf32>
    %220 = tpu.matmul %219, %214, %cst_70 {dimension_numbers = #tpu.dot_dimension_numbers<[1], [0], [0], [1], [0, 0, 1, 1], [], []>} : vector<64x32xbf16>, vector<32x128xbf16>, vector<64x128xf32> -> vector<64x128xf32>
    %221 = vector.broadcast %216 : vector<1x128xf32> to vector<64x128xf32>
    %222 = arith.addf %220, %221 : vector<64x128xf32>
    %223 = vector.shape_cast %222 : vector<64x128xf32> to vector<8x8x128xf32>
    %c0_71 = arith.constant 0 : index
    %c0_72 = arith.constant 0 : index
    %c0_73 = arith.constant 0 : index
    %224 = vector.load %arg12[%c0_71, %c0_72, %c0_73] : memref<8x8x128xf32, #tpu.memory_space<vmem>>, vector<8x8x128xf32>
    tpu.vector_store %arg12[%c0_71, %c0_72, %c0_73], %223 {strides = array<i32>} : memref<8x8x128xf32, #tpu.memory_space<vmem>>, vector<8x8x128xf32>,
    %cst_74 = arith.constant 0.000000e+00 : f32
    %225 = vector.broadcast %cst_74 : f32 to vector<8x32xf32>
    %cst_75 = arith.constant 0.000000e+00 : f32
    %226 = vector.broadcast %cst_75 : f32 to vector<8x32xf32>
    %c0_i32_76 = arith.constant 0 : i32
    %227 = arith.index_cast %c0_i32_76 : i32 to index
    %c0_77 = arith.constant 0 : index
    %c0_78 = arith.constant 0 : index
    %228 = vector.load %arg12[%227, %c0_77, %c0_78] : memref<8x8x128xf32, #tpu.memory_space<vmem>>, vector<1x8x128xf32>
    %229 = vector.shape_cast %228 : vector<1x8x128xf32> to vector<8x128xf32>
    %230 = arith.truncf %225 : vector<8x32xf32> to vector<8x32xbf16>
    %cst_79 = arith.constant dense<0.000000e+00> : vector<8x128xf32>
    %231 = tpu.matmul %230, %215, %cst_79 {dimension_numbers = #tpu.dot_dimension_numbers<[1], [0], [0], [1], [0, 0, 1, 1], [], []>} : vector<8x32xbf16>, vector<32x128xbf16>, vector<8x128xf32> -> vector<8x128xf32>
    %232 = arith.addf %229, %231 : vector<8x128xf32>
    %233 = arith.negf %232 : vector<8x128xf32>
    %234 = math.exp %233 : vector<8x128xf32>
    %cst_80 = arith.constant 1.000000e+00 : f32
    %235 = vector.broadcast %cst_80 : f32 to vector<8x128xf32>
    %236 = arith.addf %235, %234 : vector<8x128xf32>
    %237 = arith.divf %235, %236 : vector<8x128xf32>
    %238 = math.tanh %232 : vector<8x128xf32>
    %239 = vector.extract_strided_slice %237 {offsets = [0, 0], sizes = [8, 32], strides = [1, 1]} : vector<8x128xf32> to vector<8x32xf32>
    %240 = vector.extract_strided_slice %237 {offsets = [0, 32], sizes = [8, 32], strides = [1, 1]} : vector<8x128xf32> to vector<8x32xf32>
    %241 = vector.extract_strided_slice %238 {offsets = [0, 64], sizes = [8, 32], strides = [1, 1]} : vector<8x128xf32> to vector<8x32xf32>
    %242 = vector.extract_strided_slice %237 {offsets = [0, 96], sizes = [8, 32], strides = [1, 1]} : vector<8x128xf32> to vector<8x32xf32>
    %243 = arith.mulf %240, %226 : vector<8x32xf32>
    %244 = arith.mulf %239, %241 : vector<8x32xf32>
    %245 = arith.addf %243, %244 : vector<8x32xf32>
    %246 = math.tanh %245 : vector<8x32xf32>
    %247 = arith.mulf %242, %246 : vector<8x32xf32>
    %c1_i32_81 = arith.constant 1 : i32
    %248 = arith.index_cast %c1_i32_81 : i32 to index
    %c0_82 = arith.constant 0 : index
    %c0_83 = arith.constant 0 : index
    %249 = vector.load %arg12[%248, %c0_82, %c0_83] : memref<8x8x128xf32, #tpu.memory_space<vmem>>, vector<1x8x128xf32>
    %250 = vector.shape_cast %249 : vector<1x8x128xf32> to vector<8x128xf32>
    %251 = arith.truncf %247 : vector<8x32xf32> to vector<8x32xbf16>
    %cst_84 = arith.constant dense<0.000000e+00> : vector<8x128xf32>
    %252 = tpu.matmul %251, %215, %cst_84 {dimension_numbers = #tpu.dot_dimension_numbers<[1], [0], [0], [1], [0, 0, 1, 1], [], []>} : vector<8x32xbf16>, vector<32x128xbf16>, vector<8x128xf32> -> vector<8x128xf32>
    %253 = arith.addf %250, %252 : vector<8x128xf32>
    %254 = arith.negf %253 : vector<8x128xf32>
    %255 = math.exp %254 : vector<8x128xf32>
    %cst_85 = arith.constant 1.000000e+00 : f32
    %256 = vector.broadcast %cst_85 : f32 to vector<8x128xf32>
    %257 = arith.addf %256, %255 : vector<8x128xf32>
    %258 = arith.divf %256, %257 : vector<8x128xf32>
    %259 = math.tanh %253 : vector<8x128xf32>
    %260 = vector.extract_strided_slice %258 {offsets = [0, 0], sizes = [8, 32], strides = [1, 1]} : vector<8x128xf32> to vector<8x32xf32>
    %261 = vector.extract_strided_slice %258 {offsets = [0, 32], sizes = [8, 32], strides = [1, 1]} : vector<8x128xf32> to vector<8x32xf32>
    %262 = vector.extract_strided_slice %259 {offsets = [0, 64], sizes = [8, 32], strides = [1, 1]} : vector<8x128xf32> to vector<8x32xf32>
    %263 = vector.extract_strided_slice %258 {offsets = [0, 96], sizes = [8, 32], strides = [1, 1]} : vector<8x128xf32> to vector<8x32xf32>
    %264 = arith.mulf %261, %245 : vector<8x32xf32>
    %265 = arith.mulf %260, %262 : vector<8x32xf32>
    %266 = arith.addf %264, %265 : vector<8x32xf32>
    %267 = math.tanh %266 : vector<8x32xf32>
    %268 = arith.mulf %263, %267 : vector<8x32xf32>
    %c2_i32_86 = arith.constant 2 : i32
    %269 = arith.index_cast %c2_i32_86 : i32 to index
    %c0_87 = arith.constant 0 : index
    %c0_88 = arith.constant 0 : index
    %270 = vector.load %arg12[%269, %c0_87, %c0_88] : memref<8x8x128xf32, #tpu.memory_space<vmem>>, vector<1x8x128xf32>
    %271 = vector.shape_cast %270 : vector<1x8x128xf32> to vector<8x128xf32>
    %272 = arith.truncf %268 : vector<8x32xf32> to vector<8x32xbf16>
    %cst_89 = arith.constant dense<0.000000e+00> : vector<8x128xf32>
    %273 = tpu.matmul %272, %215, %cst_89 {dimension_numbers = #tpu.dot_dimension_numbers<[1], [0], [0], [1], [0, 0, 1, 1], [], []>} : vector<8x32xbf16>, vector<32x128xbf16>, vector<8x128xf32> -> vector<8x128xf32>
    %274 = arith.addf %271, %273 : vector<8x128xf32>
    %275 = arith.negf %274 : vector<8x128xf32>
    %276 = math.exp %275 : vector<8x128xf32>
    %cst_90 = arith.constant 1.000000e+00 : f32
    %277 = vector.broadcast %cst_90 : f32 to vector<8x128xf32>
    %278 = arith.addf %277, %276 : vector<8x128xf32>
    %279 = arith.divf %277, %278 : vector<8x128xf32>
    %280 = math.tanh %274 : vector<8x128xf32>
    %281 = vector.extract_strided_slice %279 {offsets = [0, 0], sizes = [8, 32], strides = [1, 1]} : vector<8x128xf32> to vector<8x32xf32>
    %282 = vector.extract_strided_slice %279 {offsets = [0, 32], sizes = [8, 32], strides = [1, 1]} : vector<8x128xf32> to vector<8x32xf32>
    %283 = vector.extract_strided_slice %280 {offsets = [0, 64], sizes = [8, 32], strides = [1, 1]} : vector<8x128xf32> to vector<8x32xf32>
    %284 = vector.extract_strided_slice %279 {offsets = [0, 96], sizes = [8, 32], strides = [1, 1]} : vector<8x128xf32> to vector<8x32xf32>
    %285 = arith.mulf %282, %266 : vector<8x32xf32>
    %286 = arith.mulf %281, %283 : vector<8x32xf32>
    %287 = arith.addf %285, %286 : vector<8x32xf32>
    %288 = math.tanh %287 : vector<8x32xf32>
    %289 = arith.mulf %284, %288 : vector<8x32xf32>
    %c3_i32_91 = arith.constant 3 : i32
    %290 = arith.index_cast %c3_i32_91 : i32 to index
    %c0_92 = arith.constant 0 : index
    %c0_93 = arith.constant 0 : index
    %291 = vector.load %arg12[%290, %c0_92, %c0_93] : memref<8x8x128xf32, #tpu.memory_space<vmem>>, vector<1x8x128xf32>
    %292 = vector.shape_cast %291 : vector<1x8x128xf32> to vector<8x128xf32>
    %293 = arith.truncf %289 : vector<8x32xf32> to vector<8x32xbf16>
    %cst_94 = arith.constant dense<0.000000e+00> : vector<8x128xf32>
    %294 = tpu.matmul %293, %215, %cst_94 {dimension_numbers = #tpu.dot_dimension_numbers<[1], [0], [0], [1], [0, 0, 1, 1], [], []>} : vector<8x32xbf16>, vector<32x128xbf16>, vector<8x128xf32> -> vector<8x128xf32>
    %295 = arith.addf %292, %294 : vector<8x128xf32>
    %296 = arith.negf %295 : vector<8x128xf32>
    %297 = math.exp %296 : vector<8x128xf32>
    %cst_95 = arith.constant 1.000000e+00 : f32
    %298 = vector.broadcast %cst_95 : f32 to vector<8x128xf32>
    %299 = arith.addf %298, %297 : vector<8x128xf32>
    %300 = arith.divf %298, %299 : vector<8x128xf32>
    %301 = math.tanh %295 : vector<8x128xf32>
    %302 = vector.extract_strided_slice %300 {offsets = [0, 0], sizes = [8, 32], strides = [1, 1]} : vector<8x128xf32> to vector<8x32xf32>
    %303 = vector.extract_strided_slice %300 {offsets = [0, 32], sizes = [8, 32], strides = [1, 1]} : vector<8x128xf32> to vector<8x32xf32>
    %304 = vector.extract_strided_slice %301 {offsets = [0, 64], sizes = [8, 32], strides = [1, 1]} : vector<8x128xf32> to vector<8x32xf32>
    %305 = vector.extract_strided_slice %300 {offsets = [0, 96], sizes = [8, 32], strides = [1, 1]} : vector<8x128xf32> to vector<8x32xf32>
    %306 = arith.mulf %303, %287 : vector<8x32xf32>
    %307 = arith.mulf %302, %304 : vector<8x32xf32>
    %308 = arith.addf %306, %307 : vector<8x32xf32>
    %309 = math.tanh %308 : vector<8x32xf32>
    %310 = arith.mulf %305, %309 : vector<8x32xf32>
    %c4_i32_96 = arith.constant 4 : i32
    %311 = arith.index_cast %c4_i32_96 : i32 to index
    %c0_97 = arith.constant 0 : index
    %c0_98 = arith.constant 0 : index
    %312 = vector.load %arg12[%311, %c0_97, %c0_98] : memref<8x8x128xf32, #tpu.memory_space<vmem>>, vector<1x8x128xf32>
    %313 = vector.shape_cast %312 : vector<1x8x128xf32> to vector<8x128xf32>
    %314 = arith.truncf %310 : vector<8x32xf32> to vector<8x32xbf16>
    %cst_99 = arith.constant dense<0.000000e+00> : vector<8x128xf32>
    %315 = tpu.matmul %314, %215, %cst_99 {dimension_numbers = #tpu.dot_dimension_numbers<[1], [0], [0], [1], [0, 0, 1, 1], [], []>} : vector<8x32xbf16>, vector<32x128xbf16>, vector<8x128xf32> -> vector<8x128xf32>
    %316 = arith.addf %313, %315 : vector<8x128xf32>
    %317 = arith.negf %316 : vector<8x128xf32>
    %318 = math.exp %317 : vector<8x128xf32>
    %cst_100 = arith.constant 1.000000e+00 : f32
    %319 = vector.broadcast %cst_100 : f32 to vector<8x128xf32>
    %320 = arith.addf %319, %318 : vector<8x128xf32>
    %321 = arith.divf %319, %320 : vector<8x128xf32>
    %322 = math.tanh %316 : vector<8x128xf32>
    %323 = vector.extract_strided_slice %321 {offsets = [0, 0], sizes = [8, 32], strides = [1, 1]} : vector<8x128xf32> to vector<8x32xf32>
    %324 = vector.extract_strided_slice %321 {offsets = [0, 32], sizes = [8, 32], strides = [1, 1]} : vector<8x128xf32> to vector<8x32xf32>
    %325 = vector.extract_strided_slice %322 {offsets = [0, 64], sizes = [8, 32], strides = [1, 1]} : vector<8x128xf32> to vector<8x32xf32>
    %326 = vector.extract_strided_slice %321 {offsets = [0, 96], sizes = [8, 32], strides = [1, 1]} : vector<8x128xf32> to vector<8x32xf32>
    %327 = arith.mulf %324, %308 : vector<8x32xf32>
    %328 = arith.mulf %323, %325 : vector<8x32xf32>
    %329 = arith.addf %327, %328 : vector<8x32xf32>
    %330 = math.tanh %329 : vector<8x32xf32>
    %331 = arith.mulf %326, %330 : vector<8x32xf32>
    %c5_i32_101 = arith.constant 5 : i32
    %332 = arith.index_cast %c5_i32_101 : i32 to index
    %c0_102 = arith.constant 0 : index
    %c0_103 = arith.constant 0 : index
    %333 = vector.load %arg12[%332, %c0_102, %c0_103] : memref<8x8x128xf32, #tpu.memory_space<vmem>>, vector<1x8x128xf32>
    %334 = vector.shape_cast %333 : vector<1x8x128xf32> to vector<8x128xf32>
    %335 = arith.truncf %331 : vector<8x32xf32> to vector<8x32xbf16>
    %cst_104 = arith.constant dense<0.000000e+00> : vector<8x128xf32>
    %336 = tpu.matmul %335, %215, %cst_104 {dimension_numbers = #tpu.dot_dimension_numbers<[1], [0], [0], [1], [0, 0, 1, 1], [], []>} : vector<8x32xbf16>, vector<32x128xbf16>, vector<8x128xf32> -> vector<8x128xf32>
    %337 = arith.addf %334, %336 : vector<8x128xf32>
    %338 = arith.negf %337 : vector<8x128xf32>
    %339 = math.exp %338 : vector<8x128xf32>
    %cst_105 = arith.constant 1.000000e+00 : f32
    %340 = vector.broadcast %cst_105 : f32 to vector<8x128xf32>
    %341 = arith.addf %340, %339 : vector<8x128xf32>
    %342 = arith.divf %340, %341 : vector<8x128xf32>
    %343 = math.tanh %337 : vector<8x128xf32>
    %344 = vector.extract_strided_slice %342 {offsets = [0, 0], sizes = [8, 32], strides = [1, 1]} : vector<8x128xf32> to vector<8x32xf32>
    %345 = vector.extract_strided_slice %342 {offsets = [0, 32], sizes = [8, 32], strides = [1, 1]} : vector<8x128xf32> to vector<8x32xf32>
    %346 = vector.extract_strided_slice %343 {offsets = [0, 64], sizes = [8, 32], strides = [1, 1]} : vector<8x128xf32> to vector<8x32xf32>
    %347 = vector.extract_strided_slice %342 {offsets = [0, 96], sizes = [8, 32], strides = [1, 1]} : vector<8x128xf32> to vector<8x32xf32>
    %348 = arith.mulf %345, %329 : vector<8x32xf32>
    %349 = arith.mulf %344, %346 : vector<8x32xf32>
    %350 = arith.addf %348, %349 : vector<8x32xf32>
    %351 = math.tanh %350 : vector<8x32xf32>
    %352 = arith.mulf %347, %351 : vector<8x32xf32>
    %c6_i32_106 = arith.constant 6 : i32
    %353 = arith.index_cast %c6_i32_106 : i32 to index
    %c0_107 = arith.constant 0 : index
    %c0_108 = arith.constant 0 : index
    %354 = vector.load %arg12[%353, %c0_107, %c0_108] : memref<8x8x128xf32, #tpu.memory_space<vmem>>, vector<1x8x128xf32>
    %355 = vector.shape_cast %354 : vector<1x8x128xf32> to vector<8x128xf32>
    %356 = arith.truncf %352 : vector<8x32xf32> to vector<8x32xbf16>
    %cst_109 = arith.constant dense<0.000000e+00> : vector<8x128xf32>
    %357 = tpu.matmul %356, %215, %cst_109 {dimension_numbers = #tpu.dot_dimension_numbers<[1], [0], [0], [1], [0, 0, 1, 1], [], []>} : vector<8x32xbf16>, vector<32x128xbf16>, vector<8x128xf32> -> vector<8x128xf32>
    %358 = arith.addf %355, %357 : vector<8x128xf32>
    %359 = arith.negf %358 : vector<8x128xf32>
    %360 = math.exp %359 : vector<8x128xf32>
    %cst_110 = arith.constant 1.000000e+00 : f32
    %361 = vector.broadcast %cst_110 : f32 to vector<8x128xf32>
    %362 = arith.addf %361, %360 : vector<8x128xf32>
    %363 = arith.divf %361, %362 : vector<8x128xf32>
    %364 = math.tanh %358 : vector<8x128xf32>
    %365 = vector.extract_strided_slice %363 {offsets = [0, 0], sizes = [8, 32], strides = [1, 1]} : vector<8x128xf32> to vector<8x32xf32>
    %366 = vector.extract_strided_slice %363 {offsets = [0, 32], sizes = [8, 32], strides = [1, 1]} : vector<8x128xf32> to vector<8x32xf32>
    %367 = vector.extract_strided_slice %364 {offsets = [0, 64], sizes = [8, 32], strides = [1, 1]} : vector<8x128xf32> to vector<8x32xf32>
    %368 = vector.extract_strided_slice %363 {offsets = [0, 96], sizes = [8, 32], strides = [1, 1]} : vector<8x128xf32> to vector<8x32xf32>
    %369 = arith.mulf %366, %350 : vector<8x32xf32>
    %370 = arith.mulf %365, %367 : vector<8x32xf32>
    %371 = arith.addf %369, %370 : vector<8x32xf32>
    %372 = math.tanh %371 : vector<8x32xf32>
    %373 = arith.mulf %368, %372 : vector<8x32xf32>
    %c7_i32_111 = arith.constant 7 : i32
    %374 = arith.index_cast %c7_i32_111 : i32 to index
    %c0_112 = arith.constant 0 : index
    %c0_113 = arith.constant 0 : index
    %375 = vector.load %arg12[%374, %c0_112, %c0_113] : memref<8x8x128xf32, #tpu.memory_space<vmem>>, vector<1x8x128xf32>
    %376 = vector.shape_cast %375 : vector<1x8x128xf32> to vector<8x128xf32>
    %377 = arith.truncf %373 : vector<8x32xf32> to vector<8x32xbf16>
    %cst_114 = arith.constant dense<0.000000e+00> : vector<8x128xf32>
    %378 = tpu.matmul %377, %215, %cst_114 {dimension_numbers = #tpu.dot_dimension_numbers<[1], [0], [0], [1], [0, 0, 1, 1], [], []>} : vector<8x32xbf16>, vector<32x128xbf16>, vector<8x128xf32> -> vector<8x128xf32>
    %379 = arith.addf %376, %378 : vector<8x128xf32>
    %380 = arith.negf %379 : vector<8x128xf32>
    %381 = math.exp %380 : vector<8x128xf32>
    %cst_115 = arith.constant 1.000000e+00 : f32
    %382 = vector.broadcast %cst_115 : f32 to vector<8x128xf32>
    %383 = arith.addf %382, %381 : vector<8x128xf32>
    %384 = arith.divf %382, %383 : vector<8x128xf32>
    %385 = math.tanh %379 : vector<8x128xf32>
    %386 = vector.extract_strided_slice %384 {offsets = [0, 0], sizes = [8, 32], strides = [1, 1]} : vector<8x128xf32> to vector<8x32xf32>
    %387 = vector.extract_strided_slice %384 {offsets = [0, 32], sizes = [8, 32], strides = [1, 1]} : vector<8x128xf32> to vector<8x32xf32>
    %388 = vector.extract_strided_slice %385 {offsets = [0, 64], sizes = [8, 32], strides = [1, 1]} : vector<8x128xf32> to vector<8x32xf32>
    %389 = vector.extract_strided_slice %384 {offsets = [0, 96], sizes = [8, 32], strides = [1, 1]} : vector<8x128xf32> to vector<8x32xf32>
    %390 = arith.mulf %387, %371 : vector<8x32xf32>
    %391 = arith.mulf %386, %388 : vector<8x32xf32>
    %392 = arith.addf %390, %391 : vector<8x32xf32>
    %393 = math.tanh %392 : vector<8x32xf32>
    %394 = arith.mulf %389, %393 : vector<8x32xf32>
    %c8_i32_116 = arith.constant 8 : i32
    %395 = arith.truncf %394 : vector<8x32xf32> to vector<8x32xbf16>
    %c0_117 = arith.constant 0 : index
    %c0_118 = arith.constant 0 : index
    %396 = vector.load %arg8[%c0_117, %c0_118] : memref<32x128xbf16, #tpu.memory_space<vmem>>, vector<32x128xbf16>
    %cst_119 = arith.constant dense<0.000000e+00> : vector<8x128xf32>
    %397 = tpu.matmul %395, %396, %cst_119 {dimension_numbers = #tpu.dot_dimension_numbers<[1], [0], [0], [1], [0, 0, 1, 1], [], []>} : vector<8x32xbf16>, vector<32x128xbf16>, vector<8x128xf32> -> vector<8x128xf32>
    %c0_120 = arith.constant 0 : index
    %c0_121 = arith.constant 0 : index
    %398 = vector.load %arg9[%c0_120, %c0_121] : memref<1x128xf32, #tpu.memory_space<vmem>>, vector<1x128xf32>
    %399 = vector.broadcast %398 : vector<1x128xf32> to vector<8x128xf32>
    %400 = arith.addf %397, %399 : vector<8x128xf32>
    %c0_122 = arith.constant 0 : index
    %c0_123 = arith.constant 0 : index
    %401 = vector.load %arg10[%c0_122, %c0_123] : memref<8x128xf32, #tpu.memory_space<vmem>>, vector<8x128xf32>
    tpu.vector_store %arg10[%c0_122, %c0_123], %400 {strides = array<i32>} : memref<8x128xf32, #tpu.memory_space<vmem>>, vector<8x128xf32>,
    return
  }
  func.func @transform_0(%arg0: i32) -> (i32, i32, i32) {
    %c0_i32 = arith.constant 0 : i32
    %c0_i32_0 = arith.constant 0 : i32
    %c0_i32_1 = arith.constant 0 : i32
    return %arg0, %c0_i32, %c0_i32_0 : i32, i32, i32
  }
  func.func @transform_1(%arg0: i32) -> (i32, i32) {
    %c0_i32 = arith.constant 0 : i32
    %c0_i32_0 = arith.constant 0 : i32
    %c0_i32_1 = arith.constant 0 : i32
    return %c0_i32, %c0_i32_0 : i32, i32
  }
  func.func @transform_2(%arg0: i32) -> (i32, i32) {
    %c0_i32 = arith.constant 0 : i32
    %c0_i32_0 = arith.constant 0 : i32
    %c0_i32_1 = arith.constant 0 : i32
    return %c0_i32, %c0_i32_0 : i32, i32
  }
  func.func @transform_3(%arg0: i32) -> (i32, i32) {
    %c0_i32 = arith.constant 0 : i32
    %c0_i32_0 = arith.constant 0 : i32
    %c0_i32_1 = arith.constant 0 : i32
    return %c0_i32, %c0_i32_0 : i32, i32
  }
  func.func @transform_4(%arg0: i32) -> (i32, i32) {
    %c0_i32 = arith.constant 0 : i32
    %c0_i32_0 = arith.constant 0 : i32
    %c0_i32_1 = arith.constant 0 : i32
    return %c0_i32, %c0_i32_0 : i32, i32
  }
  func.func @transform_5(%arg0: i32) -> (i32, i32) {
    %c0_i32 = arith.constant 0 : i32
    %c0_i32_0 = arith.constant 0 : i32
    %c0_i32_1 = arith.constant 0 : i32
    return %c0_i32, %c0_i32_0 : i32, i32
  }
  func.func @transform_6(%arg0: i32) -> (i32, i32) {
    %c0_i32 = arith.constant 0 : i32
    %c0_i32_0 = arith.constant 0 : i32
    %c0_i32_1 = arith.constant 0 : i32
    return %c0_i32, %c0_i32_0 : i32, i32
  }
  func.func @transform_7(%arg0: i32) -> (i32, i32) {
    %c0_i32 = arith.constant 0 : i32
    %c0_i32_0 = arith.constant 0 : i32
    %c0_i32_1 = arith.constant 0 : i32
    return %c0_i32, %c0_i32_0 : i32, i32
  }
  func.func @transform_8(%arg0: i32) -> (i32, i32) {
    %c0_i32 = arith.constant 0 : i32
    %c0_i32_0 = arith.constant 0 : i32
    %c0_i32_1 = arith.constant 0 : i32
    return %c0_i32, %c0_i32_0 : i32, i32
  }
  func.func @transform_9(%arg0: i32) -> (i32, i32) {
    %c0_i32 = arith.constant 0 : i32
    %c0_i32_0 = arith.constant 0 : i32
    return %arg0, %c0_i32 : i32, i32
  }
}

</mosaic_0001>

<llo_original>
// kernel: tpu_custom_call.1
$region0: #{tpu_custom_call.1}
  #allocation0 [shape = 'u32[]', space=smem, size = 0x4, offset = 0x4, fixed_abs, tag = 'smem constant byte address 0x4 - core index']
  #allocation1 [shape = 'u32[144,128]{1,0:T(1,128)}', space=vmem, size = 0x12000, scoped, tag = 'internal scratch']
  #allocation2 [shape = 'f32[8,8,32]{2,1,0:T(8,128)}', space=vmem, size = 0x8000, scoped, tag = 'scratch operand']
  #allocation3 [shape = 'f32[8,8,128]{2,1,0:T(8,128)}', space=vmem, size = 0x8000, scoped, tag = 'scratch operand']
  %s0 = inlined_call_operand.vmem [shape: f32[8,8,4], index: 0, kind: input, shape index: {}]
  %s1 = inlined_call_operand.vmem [shape: bf16[4,128], index: 1, kind: input, shape index: {}]
  %s2 = inlined_call_operand.vmem [shape: bf16[32,128], index: 2, kind: input, shape index: {}]
  %s3 = inlined_call_operand.vmem [shape: f32[1,128], index: 3, kind: input, shape index: {}]
  %s4 = inlined_call_operand.vmem [shape: bf16[32,128], index: 4, kind: input, shape index: {}]
  %s5 = inlined_call_operand.vmem [shape: bf16[32,128], index: 5, kind: input, shape index: {}]
  %s6 = inlined_call_operand.vmem [shape: f32[1,128], index: 6, kind: input, shape index: {}]
  %s7 = inlined_call_operand.vmem [shape: bf16[32,128], index: 7, kind: input, shape index: {}]
  %s8 = inlined_call_operand.vmem [shape: f32[1,128], index: 8, kind: input, shape index: {}]
  %s9 = inlined_call_operand.hbm [shape: f32[8,128], index: 9, kind: output, shape index: {}]
  %s10 = sld [smem:[#allocation0]]
  $region46: #{tpu_custom_call.1} parent=0
    _
  %s12 = ssub.s32 1, %s10
  %s13 = scalar_select 0, %s12, %s10
  $region1: #{tpu_custom_call.1} parent=0
    #allocation4 [shape = 'u8[4096]{0}', space=vmem, size = 0x1000, scoped, tag = 'output window, operand 0, single buffered']
    #allocation5 [shape = 's32[1]{0}', space=sflag, size = 0x4, scoped, tag = 'scoped memory for tpu_custom_call.1']
    %14 = vsyncpa [#allocation5], 0
    // Predicated region
    $region2: #{tpu_custom_call.1} parent=1 // pred_check
      _
    $region3: #{tpu_custom_call.1} parent=1 // pred_check_branch
      %16 = sbr.rel (0) target = $region5
    $region4: #{tpu_custom_call.1} parent=1 // pred_region
      _
    $region5: #{tpu_custom_call.1} parent=1 // pred_fallthru
      _
    // Predicated region
    $region6: #{tpu_custom_call.1} parent=1 // pred_check
      _
    $region7: #{tpu_custom_call.1} parent=1 // pred_check_branch
      %18 = sbr.rel (0) target = $region9
    $region8: #{tpu_custom_call.1} parent=1 // pred_region
      _
    $region9: #{tpu_custom_call.1} parent=1 // pred_fallthru
      _
    // Predicated region
    $region10: #{tpu_custom_call.1} parent=1 // pred_check
      _
    $region11: #{tpu_custom_call.1} parent=1 // pred_check_branch
      %20 = sbr.rel (0) target = $region13
    $region12: #{tpu_custom_call.1} parent=1 // pred_region
      _
    $region13: #{tpu_custom_call.1} parent=1 // pred_fallthru
      _
    // Predicated region
    $region14: #{tpu_custom_call.1} parent=1 // pred_check
      _
    $region15: #{tpu_custom_call.1} parent=1 // pred_check_branch
      %22 = sbr.rel (0) target = $region17
    $region16: #{tpu_custom_call.1} parent=1 // pred_region
      _
    $region17: #{tpu_custom_call.1} parent=1 // pred_fallthru
      _
    // Predicated region
    $region18: #{tpu_custom_call.1} parent=1 // pred_check
      _
    $region19: #{tpu_custom_call.1} parent=1 // pred_check_branch
      %24 = sbr.rel (0) target = $region21
    $region20: #{tpu_custom_call.1} parent=1 // pred_region
      _
    $region21: #{tpu_custom_call.1} parent=1 // pred_fallthru
      _
    // Predicated region
    $region22: #{tpu_custom_call.1} parent=1 // pred_check
      _
    $region23: #{tpu_custom_call.1} parent=1 // pred_check_branch
      %26 = sbr.rel (0) target = $region25
    $region24: #{tpu_custom_call.1} parent=1 // pred_region
      _
    $region25: #{tpu_custom_call.1} parent=1 // pred_fallthru
      _
    // Predicated region
    $region26: #{tpu_custom_call.1} parent=1 // pred_check
      _
    $region27: #{tpu_custom_call.1} parent=1 // pred_check_branch
      %28 = sbr.rel (0) target = $region29
    $region28: #{tpu_custom_call.1} parent=1 // pred_region
      _
    $region29: #{tpu_custom_call.1} parent=1 // pred_fallthru
      _
    // Predicated region
    $region30: #{tpu_custom_call.1} parent=1 // pred_check
      _
    $region31: #{tpu_custom_call.1} parent=1 // pred_check_branch
      %30 = sbr.rel (0) target = $region33
    $region32: #{tpu_custom_call.1} parent=1 // pred_region
      _
    $region33: #{tpu_custom_call.1} parent=1 // pred_fallthru
      _
    // Predicated region
    $region34: #{tpu_custom_call.1} parent=1 // pred_check
      _
    $region35: #{tpu_custom_call.1} parent=1 // pred_check_branch
      %32 = sbr.rel (0) target = $region37
    $region36: #{tpu_custom_call.1} parent=1 // pred_region
      _
    $region37: #{tpu_custom_call.1} parent=1 // pred_fallthru
      _
    %v34 = vld [vmem:[%s1] sm:$0x3]
    %v35 = vld [vmem:[%s2] sm:$0xf]
    %v36 = vld [vmem:[%s2 + $0x4] sm:$0xf]
    %v37 = vld [vmem:[%s2 + $0x8] sm:$0xf]
    %v38 = vld [vmem:[%s2 + $0xc] sm:$0xf]
    %v39 = vld [vmem:[%s3] sm:$0x1]
    %v40 = vld [vmem:[%s0] sm:$0xff]
    %v41 = vld [vmem:[%s0 + $0x8] sm:$0xff]
    %v42 = vld [vmem:[%s0 + $0x10] sm:$0xff]
    %v43 = vld [vmem:[%s0 + $0x18] sm:$0xff]
    %v44 = vld [vmem:[%s0 + $0x20] sm:$0xff]
    %v45 = vld [vmem:[%s0 + $0x28] sm:$0xff]
    %v46 = vld [vmem:[%s0 + $0x30] sm:$0xff]
    %v47 = vld [vmem:[%s0 + $0x38] sm:$0xff]
    %v48 = vpack.c.bf16 %v41, %v40
    %v49 = vpack.c.bf16 %v43, %v42
    %v50 = vpack.c.bf16 %v45, %v44
    %v51 = vpack.c.bf16 %v47, %v46
    %v53 = vlaneseq
    %v54 = vshrl.u32 %v53, 7
    %v55 = vsub.s32 0, %v54
    %v56 = vrot.slane %v39, %v55
    %vm58 = vcmask 31744
    %v60 = vsel %vm58, %v48, 0
    %v63 = vsel %vm58, %v49, 0
    %v66 = vsel %vm58, %v50, 0
    %v69 = vsel %vm58, %v51, 0
    %vm71 = vcmask 1041408
    %v73 = vsel %vm71, %v34, 0
    %75 = vmatprep.subr.bf16.mxu0 0
    %76 = vmatpush1.bf16.msra.mxu0 0
    %77 = vmatprep.subr.bf16.mxu0 0
    %78 = vmatpush1.bf16.msra.mxu0 0
    %79 = vmatprep.subr.bf16.mxu0 0
    %80 = vmatpush1.bf16.msra.mxu0 0
    %81 = vmatprep.subr.bf16.mxu0 0
    %82 = vmatpush1.bf16.msra.mxu0 0
    %83 = vmatprep.subr.bf16.mxu0 0
    %84 = vmatpush1.bf16.msra.mxu0 0
    %85 = vmatprep.subr.bf16.mxu0 0
    %86 = vmatpush1.bf16.msra.mxu0 0
    %87 = vmatprep.subr.bf16.mxu0 0
    %88 = vmatpush1.bf16.msra.mxu0 0
    %89 = vmatprep.subr.bf16.mxu0 0
    %90 = vmatpush1.bf16.msra.mxu0 %v73
    %91 = vmatprep.subr.bf16.mxu0 0
    %92 = vmatpush2.bf16.msra.mxu0 0
    %93 = vmatprep.subr.bf16.mxu0 0
    %94 = vmatpush2.bf16.msra.mxu0 0
    %95 = vmatprep.subr.bf16.mxu0 0
    %96 = vmatpush2.bf16.msra.mxu0 0
    %97 = vmatprep.subr.bf16.mxu0 0
    %98 = vmatpush2.bf16.msra.mxu0 0
    %99 = vmatprep.subr.bf16.mxu0 0
    %100 = vmatpush2.bf16.msra.mxu0 0
    %101 = vmatprep.subr.bf16.mxu0 0
    %102 = vmatpush2.bf16.msra.mxu0 0
    %103 = vmatprep.subr.bf16.mxu0 0
    %104 = vmatpush2.bf16.msra.mxu0 0
    %105 = vmatprep.subr.bf16.mxu0 0
    %106 = vmatpush2.bf16.msra.mxu0 0
    %107 = vmatprep.mubr.bf16.mxu0 0
    %108 = vmatmul.mubr.bf16.gmra.mxu0 %v60
    %v109 = vpop.f32.mrf.mxu0
    %v110 = vadd.f32 %v56, %v109
    %v111 = vpop.f32.mrf.mxu0
    %v112 = vpop.f32.mrf.mxu0
    %v113 = vadd.f32 %v56, %v112
    %v114 = vpop.f32.mrf.mxu0
    %115 = vmatprep.mubr.bf16.mxu0 0
    %116 = vmatmul.mubr.bf16.gmra.mxu0 %v63
    %v117 = vpop.f32.mrf.mxu0
    %v118 = vadd.f32 %v56, %v117
    %v119 = vpop.f32.mrf.mxu0
    %v120 = vpop.f32.mrf.mxu0
    %v121 = vadd.f32 %v56, %v120
    %v122 = vpop.f32.mrf.mxu0
    %123 = vmatprep.mubr.bf16.mxu0 0
    %124 = vmatmul.mubr.bf16.gmra.mxu0 %v66
    %v125 = vpop.f32.mrf.mxu0
    %v126 = vadd.f32 %v56, %v125
    %v127 = vpop.f32.mrf.mxu0
    %v128 = vpop.f32.mrf.mxu0
    %v129 = vadd.f32 %v56, %v128
    %v130 = vpop.f32.mrf.mxu0
    %131 = vmatprep.mubr.bf16.mxu0 0
    %132 = vmatmul.mubr.bf16.gmra.mxu0 %v69
    %v133 = vpop.f32.mrf.mxu0
    %v134 = vadd.f32 %v56, %v133
    %v135 = vpop.f32.mrf.mxu0
    %v136 = vpop.f32.mrf.mxu0
    %v137 = vadd.f32 %v56, %v136
    %v138 = vpop.f32.mrf.mxu0
    %139 = vdwg.mxu0
    %v140 = vcombine.low %v110, %v118
    %v141 = vcombine.high %v110, %v118
    %v143 = vunpack.c.l.s4 1983009808
    %v144 = vunpack.c.0.s8 %v143
    %v145 = vlaneseq
    %v146 = vshrl.u32 %v145, 7
    %v147 = vsub.s32 %v144, %v146
    %v148 = vrot.slane %v140, %v147
    %v150 = vunpack.c.l.s4 1983009808
    %v151 = vunpack.c.0.s8 %v150
    %v152 = vlaneseq
    %v153 = vshrl.u32 %v152, 7
    %v154 = vsub.s32 %v151, %v153
    %v155 = vrot.slane %v141, %v154
    %v156 = vcombine.low %v113, %v121
    %v157 = vcombine.high %v113, %v121
    %v159 = vunpack.c.l.s4 1983009808
    %v160 = vunpack.c.0.s8 %v159
    %v161 = vlaneseq
    %v162 = vshrl.u32 %v161, 7
    %v163 = vsub.s32 %v160, %v162
    %v164 = vrot.slane %v156, %v163
    %v166 = vunpack.c.l.s4 1983009808
    %v167 = vunpack.c.0.s8 %v166
    %v168 = vlaneseq
    %v169 = vshrl.u32 %v168, 7
    %v170 = vsub.s32 %v167, %v169
    %v171 = vrot.slane %v157, %v170
    %v172 = vcombine.low %v126, %v134
    %v173 = vcombine.high %v126, %v134
    %v175 = vunpack.c.l.s4 1983009808
    %v176 = vunpack.c.0.s8 %v175
    %v177 = vlaneseq
    %v178 = vshrl.u32 %v177, 7
    %v179 = vsub.s32 %v176, %v178
    %v180 = vrot.slane %v172, %v179
    %v182 = vunpack.c.l.s4 1983009808
    %v183 = vunpack.c.0.s8 %v182
    %v184 = vlaneseq
    %v185 = vshrl.u32 %v184, 7
    %v186 = vsub.s32 %v183, %v185
    %v187 = vrot.slane %v173, %v186
    %v188 = vcombine.low %v129, %v137
    %v189 = vcombine.high %v129, %v137
    %v191 = vunpack.c.l.s4 1983009808
    %v192 = vunpack.c.0.s8 %v191
    %v193 = vlaneseq
    %v194 = vshrl.u32 %v193, 7
    %v195 = vsub.s32 %v192, %v194
    %v196 = vrot.slane %v188, %v195
    %v198 = vunpack.c.l.s4 1983009808
    %v199 = vunpack.c.0.s8 %v198
    %v200 = vlaneseq
    %v201 = vshrl.u32 %v200, 7
    %v202 = vsub.s32 %v199, %v201
    %v203 = vrot.slane %v189, %v202
    %v204 = vcombine.low %v148, %v164
    %v205 = vcombine.high %v148, %v164
    %v207 = vunpack.c.l.s4 1934713408
    %v208 = vunpack.c.0.s8 %v207
    %v209 = vlaneseq
    %v210 = vshrl.u32 %v209, 7
    %v211 = vsub.s32 %v208, %v210
    %v212 = vrot.slane %v204, %v211
    %v214 = vunpack.c.l.s4 1934713408
    %v215 = vunpack.c.0.s8 %v214
    %v216 = vlaneseq
    %v217 = vshrl.u32 %v216, 7
    %v218 = vsub.s32 %v215, %v217
    %v219 = vrot.slane %v205, %v218
    %v220 = vcombine.low %v155, %v171
    %v221 = vcombine.high %v155, %v171
    %v223 = vunpack.c.l.s4 1934713408
    %v224 = vunpack.c.0.s8 %v223
    %v225 = vlaneseq
    %v226 = vshrl.u32 %v225, 7
    %v227 = vsub.s32 %v224, %v226
    %v228 = vrot.slane %v220, %v227
    %v230 = vunpack.c.l.s4 1934713408
    %v231 = vunpack.c.0.s8 %v230
    %v232 = vlaneseq
    %v233 = vshrl.u32 %v232, 7
    %v234 = vsub.s32 %v231, %v233
    %v235 = vrot.slane %v221, %v234
    %v236 = vcombine.low %v180, %v196
    %v237 = vcombine.high %v180, %v196
    %v239 = vunpack.c.l.s4 1934713408
    %v240 = vunpack.c.0.s8 %v239
    %v241 = vlaneseq
    %v242 = vshrl.u32 %v241, 7
    %v243 = vsub.s32 %v240, %v242
    %v244 = vrot.slane %v236, %v243
    %v246 = vunpack.c.l.s4 1934713408
    %v247 = vunpack.c.0.s8 %v246
    %v248 = vlaneseq
    %v249 = vshrl.u32 %v248, 7
    %v250 = vsub.s32 %v247, %v249
    %v251 = vrot.slane %v237, %v250
    %v252 = vcombine.low %v187, %v203
    %v253 = vcombine.high %v187, %v203
    %v255 = vunpack.c.l.s4 1934713408
    %v256 = vunpack.c.0.s8 %v255
    %v257 = vlaneseq
    %v258 = vshrl.u32 %v257, 7
    %v259 = vsub.s32 %v256, %v258
    %v260 = vrot.slane %v252, %v259
    %v262 = vunpack.c.l.s4 1934713408
    %v263 = vunpack.c.0.s8 %v262
    %v264 = vlaneseq
    %v265 = vshrl.u32 %v264, 7
    %v266 = vsub.s32 %v263, %v265
    %v267 = vrot.slane %v253, %v266
    %v268 = vcombine.low %v212, %v244
    %v269 = vcombine.high %v212, %v244
    %v270 = vcombine.low %v219, %v251
    %v271 = vcombine.high %v219, %v251
    %v272 = vcombine.low %v228, %v260
    %v273 = vcombine.high %v228, %v260
    %v274 = vcombine.low %v235, %v267
    %v275 = vcombine.high %v235, %v267
    %276 = vst [vmem:[#allocation3] sm:$0xff] %v268
    %277 = vst [vmem:[#allocation3 + $0x8] sm:$0xff] %v269
    %278 = vst [vmem:[#allocation3 + $0x10] sm:$0xff] %v270
    %279 = vst [vmem:[#allocation3 + $0x18] sm:$0xff] %v271
    %280 = vst [vmem:[#allocation3 + $0x20] sm:$0xff] %v272
    %281 = vst [vmem:[#allocation3 + $0x28] sm:$0xff] %v273
    %282 = vst [vmem:[#allocation3 + $0x30] sm:$0xff] %v274
    %283 = vst [vmem:[#allocation3 + $0x38] sm:$0xff] %v275
    %v284 = vld [vmem:[#allocation3] sm:$0xff]
    %v289 = vunpack.c.l.b16 %v35
    %v290 = vunpack.c.l.b16 %v36
    %v291 = vunpack.c.l.b16 %v37
    %v292 = vunpack.c.l.b16 %v38
    %v293 = vpack.c.b16 %v290, %v289
    %v294 = vpack.c.b16 %v292, %v291
    %vm297 = vcmask 261120
    %v299 = vsel %vm297, 0, 0
    %301 = vmatprep.subr.bf16.mxu0 0
    %302 = vmatpush1.bf16.msra.mxu0 0
    %303 = vmatprep.subr.bf16.mxu0 0
    %304 = vmatpush1.bf16.msra.mxu0 0
    %305 = vmatprep.subr.bf16.mxu0 0
    %306 = vmatpush1.bf16.msra.mxu0 0
    %307 = vmatprep.subr.bf16.mxu0 0
    %308 = vmatpush1.bf16.msra.mxu0 0
    %309 = vmatprep.subr.bf16.mxu0 0
    %310 = vmatpush1.bf16.msra.mxu0 0
    %311 = vmatprep.subr.bf16.mxu0 0
    %312 = vmatpush1.bf16.msra.mxu0 0
    %313 = vmatprep.subr.bf16.mxu0 0
    %314 = vmatpush1.bf16.msra.mxu0 %v294
    %315 = vmatprep.subr.bf16.mxu0 0
    %316 = vmatpush1.bf16.msra.mxu0 %v293
    %317 = vmatprep.subr.bf16.mxu0 0
    %318 = vmatpush2.bf16.msra.mxu0 0
    %319 = vmatprep.subr.bf16.mxu0 0
    %320 = vmatpush2.bf16.msra.mxu0 0
    %321 = vmatprep.subr.bf16.mxu0 0
    %322 = vmatpush2.bf16.msra.mxu0 0
    %323 = vmatprep.subr.bf16.mxu0 0
    %324 = vmatpush2.bf16.msra.mxu0 0
    %325 = vmatprep.subr.bf16.mxu0 0
    %326 = vmatpush2.bf16.msra.mxu0 0
    %327 = vmatprep.subr.bf16.mxu0 0
    %328 = vmatpush2.bf16.msra.mxu0 0
    %329 = vmatprep.subr.bf16.mxu0 0
    %330 = vmatpush2.bf16.msra.mxu0 0
    %331 = vmatprep.subr.bf16.mxu0 0
    %332 = vmatpush2.bf16.msra.mxu0 0
    %333 = vmatprep.mubr.bf16.mxu0 0
    %334 = vmatmul.mubr.bf16.gmra.mxu0 %v299
    %v335 = vpop.f32.mrf.mxu0
    %v336 = vadd.f32 0.0, %v335
    %v337 = vpop.f32.mrf.mxu0
    %v338 = vpop.f32.mrf.mxu0
    %v339 = vpop.f32.mrf.mxu0
    %340 = vdwg.mxu0
    %v341 = vadd.f32 %v284, %v336
    %v342 = vxor.u32 %v341, 2147483648
    %v343 = vmul.f32 %v342, 1.442695
    %v344 = vpow.pop %v343
    %v345 = vadd.f32 %v344, 1.0
    %v346 = vrcp.pop %v345
    %v347 = vmul.f32 1.0, %v346
    %v348 = vtanh.pop %v341
    %v349 = vmul.f32 %v347, 0.0
    %351 = vrot.lane.b32.xlu0 %v348, 64
    %v352 = vpop.permute.xlu0 %351
    %v354 = vmul.f32 %v347, %v352
    %356 = vrot.lane.b32.xlu0 %v354, 32
    %v357 = vpop.permute.xlu0 %356
    %v359 = vadd.f32 %v349, %v357
    %v360 = vtanh.pop %v359
    %362 = vrot.lane.b32.xlu0 %v360, 64
    %v363 = vpop.permute.xlu0 %362
    %v365 = vmul.f32 %v347, %v363
    %367 = vrot.lane.b32.xlu0 %v365, 32
    %v368 = vpop.permute.xlu0 %367
    %370 = vst.msk [vmem:[#allocation2] sm:$0xff] %vm297, %v368
    %s371 = scalar_lea.vmem [#allocation3], 8
    %v372 = vld [vmem:[%s371] sm:$0xff]
    %v373 = vpack.c.bf16 %v365, %v365
    %375 = vrot.lane.b32.xlu0 %v373, 32
    %v376 = vpop.permute.xlu0 %375
    %v378 = vsel %vm297, %v376, 0
    %380 = vmatprep.subr.bf16.mxu0 0
    %381 = vmatpush1.bf16.msra.mxu0 0
    %382 = vmatprep.subr.bf16.mxu0 0
    %383 = vmatpush1.bf16.msra.mxu0 0
    %384 = vmatprep.subr.bf16.mxu0 0
    %385 = vmatpush1.bf16.msra.mxu0 0
    %386 = vmatprep.subr.bf16.mxu0 0
    %387 = vmatpush1.bf16.msra.mxu0 0
    %388 = vmatprep.subr.bf16.mxu0 0
    %389 = vmatpush1.bf16.msra.mxu0 0
    %390 = vmatprep.subr.bf16.mxu0 0
    %391 = vmatpush1.bf16.msra.mxu0 0
    %392 = vmatprep.subr.bf16.mxu0 0
    %393 = vmatpush1.bf16.msra.mxu0 %v294
    %394 = vmatprep.subr.bf16.mxu0 0
    %395 = vmatpush1.bf16.msra.mxu0 %v293
    %396 = vmatprep.subr.bf16.mxu0 0
    %397 = vmatpush2.bf16.msra.mxu0 0
    %398 = vmatprep.subr.bf16.mxu0 0
    %399 = vmatpush2.bf16.msra.mxu0 0
    %400 = vmatprep.subr.bf16.mxu0 0
    %401 = vmatpush2.bf16.msra.mxu0 0
    %402 = vmatprep.subr.bf16.mxu0 0
    %403 = vmatpush2.bf16.msra.mxu0 0
    %404 = vmatprep.subr.bf16.mxu0 0
    %405 = vmatpush2.bf16.msra.mxu0 0
    %406 = vmatprep.subr.bf16.mxu0 0
    %407 = vmatpush2.bf16.msra.mxu0 0
    %408 = vmatprep.subr.bf16.mxu0 0
    %409 = vmatpush2.bf16.msra.mxu0 0
    %410 = vmatprep.subr.bf16.mxu0 0
    %411 = vmatpush2.bf16.msra.mxu0 0
    %412 = vmatprep.mubr.bf16.mxu0 0
    %413 = vmatmul.mubr.bf16.gmra.mxu0 %v378
    %v414 = vpop.f32.mrf.mxu0
    %v415 = vadd.f32 0.0, %v414
    %v416 = vpop.f32.mrf.mxu0
    %v417 = vpop.f32.mrf.mxu0
    %v418 = vpop.f32.mrf.mxu0
    %419 = vdwg.mxu0
    %v420 = vadd.f32 %v372, %v415
    %v421 = vxor.u32 %v420, 2147483648
    %v422 = vmul.f32 %v421, 1.442695
    %v423 = vpow.pop %v422
    %v424 = vadd.f32 %v423, 1.0
    %v425 = vrcp.pop %v424
    %v426 = vmul.f32 1.0, %v425
    %v427 = vtanh.pop %v420
    %v428 = vmul.f32 %v426, %v359
    %430 = vrot.lane.b32.xlu0 %v427, 64
    %v431 = vpop.permute.xlu0 %430
    %v433 = vmul.f32 %v426, %v431
    %435 = vrot.lane.b32.xlu0 %v433, 32
    %v436 = vpop.permute.xlu0 %435
    %v438 = vadd.f32 %v428, %v436
    %v439 = vtanh.pop %v438
    %441 = vrot.lane.b32.xlu0 %v439, 64
    %v442 = vpop.permute.xlu0 %441
    %v444 = vmul.f32 %v426, %v442
    %446 = vrot.lane.b32.xlu0 %v444, 32
    %v447 = vpop.permute.xlu0 %446
    %s449 = scalar_lea.vmem [#allocation2], 8
    %450 = vst.msk [vmem:[%s449] sm:$0xff] %vm297, %v447
    %s451 = scalar_lea.vmem [#allocation3], 16
    %v452 = vld [vmem:[%s451] sm:$0xff]
    %v453 = vpack.c.bf16 %v444, %v444
    %455 = vrot.lane.b32.xlu0 %v453, 32
    %v456 = vpop.permute.xlu0 %455
    %v458 = vsel %vm297, %v456, 0
    %460 = vmatprep.subr.bf16.mxu0 0
    %461 = vmatpush1.bf16.msra.mxu0 0
    %462 = vmatprep.subr.bf16.mxu0 0
    %463 = vmatpush1.bf16.msra.mxu0 0
    %464 = vmatprep.subr.bf16.mxu0 0
    %465 = vmatpush1.bf16.msra.mxu0 0
    %466 = vmatprep.subr.bf16.mxu0 0
    %467 = vmatpush1.bf16.msra.mxu0 0
    %468 = vmatprep.subr.bf16.mxu0 0
    %469 = vmatpush1.bf16.msra.mxu0 0
    %470 = vmatprep.subr.bf16.mxu0 0
    %471 = vmatpush1.bf16.msra.mxu0 0
    %472 = vmatprep.subr.bf16.mxu0 0
    %473 = vmatpush1.bf16.msra.mxu0 %v294
    %474 = vmatprep.subr.bf16.mxu0 0
    %475 = vmatpush1.bf16.msra.mxu0 %v293
    %476 = vmatprep.subr.bf16.mxu0 0
    %477 = vmatpush2.bf16.msra.mxu0 0
    %478 = vmatprep.subr.bf16.mxu0 0
    %479 = vmatpush2.bf16.msra.mxu0 0
    %480 = vmatprep.subr.bf16.mxu0 0
    %481 = vmatpush2.bf16.msra.mxu0 0
    %482 = vmatprep.subr.bf16.mxu0 0
    %483 = vmatpush2.bf16.msra.mxu0 0
    %484 = vmatprep.subr.bf16.mxu0 0
    %485 = vmatpush2.bf16.msra.mxu0 0
    %486 = vmatprep.subr.bf16.mxu0 0
    %487 = vmatpush2.bf16.msra.mxu0 0
    %488 = vmatprep.subr.bf16.mxu0 0
    %489 = vmatpush2.bf16.msra.mxu0 0
    %490 = vmatprep.subr.bf16.mxu0 0
    %491 = vmatpush2.bf16.msra.mxu0 0
    %492 = vmatprep.mubr.bf16.mxu0 0
    %493 = vmatmul.mubr.bf16.gmra.mxu0 %v458
    %v494 = vpop.f32.mrf.mxu0
    %v495 = vadd.f32 0.0, %v494
    %v496 = vpop.f32.mrf.mxu0
    %v497 = vpop.f32.mrf.mxu0
    %v498 = vpop.f32.mrf.mxu0
    %499 = vdwg.mxu0
    %v500 = vadd.f32 %v452, %v495
    %v501 = vxor.u32 %v500, 2147483648
    %v502 = vmul.f32 %v501, 1.442695
    %v503 = vpow.pop %v502
    %v504 = vadd.f32 %v503, 1.0
    %v505 = vrcp.pop %v504
    %v506 = vmul.f32 1.0, %v505
    %v507 = vtanh.pop %v500
    %v508 = vmul.f32 %v506, %v438
    %510 = vrot.lane.b32.xlu0 %v507, 64
    %v511 = vpop.permute.xlu0 %510
    %v513 = vmul.f32 %v506, %v511
    %515 = vrot.lane.b32.xlu0 %v513, 32
    %v516 = vpop.permute.xlu0 %515
    %v518 = vadd.f32 %v508, %v516
    %v519 = vtanh.pop %v518
    %521 = vrot.lane.b32.xlu0 %v519, 64
    %v522 = vpop.permute.xlu0 %521
    %v524 = vmul.f32 %v506, %v522
    %526 = vrot.lane.b32.xlu0 %v524, 32
    %v527 = vpop.permute.xlu0 %526
    %s529 = scalar_lea.vmem [#allocation2], 16
    %530 = vst.msk [vmem:[%s529] sm:$0xff] %vm297, %v527
    %s531 = scalar_lea.vmem [#allocation3], 24
    %v532 = vld [vmem:[%s531] sm:$0xff]
    %v533 = vpack.c.bf16 %v524, %v524
    %535 = vrot.lane.b32.xlu0 %v533, 32
    %v536 = vpop.permute.xlu0 %535
    %v538 = vsel %vm297, %v536, 0
    %540 = vmatprep.subr.bf16.mxu0 0
    %541 = vmatpush1.bf16.msra.mxu0 0
    %542 = vmatprep.subr.bf16.mxu0 0
    %543 = vmatpush1.bf16.msra.mxu0 0
    %544 = vmatprep.subr.bf16.mxu0 0
    %545 = vmatpush1.bf16.msra.mxu0 0
    %546 = vmatprep.subr.bf16.mxu0 0
    %547 = vmatpush1.bf16.msra.mxu0 0
    %548 = vmatprep.subr.bf16.mxu0 0
    %549 = vmatpush1.bf16.msra.mxu0 0
    %550 = vmatprep.subr.bf16.mxu0 0
    %551 = vmatpush1.bf16.msra.mxu0 0
    %552 = vmatprep.subr.bf16.mxu0 0
    %553 = vmatpush1.bf16.msra.mxu0 %v294
    %554 = vmatprep.subr.bf16.mxu0 0
    %555 = vmatpush1.bf16.msra.mxu0 %v293
    %556 = vmatprep.subr.bf16.mxu0 0
    %557 = vmatpush2.bf16.msra.mxu0 0
    %558 = vmatprep.subr.bf16.mxu0 0
    %559 = vmatpush2.bf16.msra.mxu0 0
    %560 = vmatprep.subr.bf16.mxu0 0
    %561 = vmatpush2.bf16.msra.mxu0 0
    %562 = vmatprep.subr.bf16.mxu0 0
    %563 = vmatpush2.bf16.msra.mxu0 0
    %564 = vmatprep.subr.bf16.mxu0 0
    %565 = vmatpush2.bf16.msra.mxu0 0
    %566 = vmatprep.subr.bf16.mxu0 0
    %567 = vmatpush2.bf16.msra.mxu0 0
    %568 = vmatprep.subr.bf16.mxu0 0
    %569 = vmatpush2.bf16.msra.mxu0 0
    %570 = vmatprep.subr.bf16.mxu0 0
    %571 = vmatpush2.bf16.msra.mxu0 0
    %572 = vmatprep.mubr.bf16.mxu0 0
    %573 = vmatmul.mubr.bf16.gmra.mxu0 %v538
    %v574 = vpop.f32.mrf.mxu0
    %v575 = vadd.f32 0.0, %v574
    %v576 = vpop.f32.mrf.mxu0
    %v577 = vpop.f32.mrf.mxu0
    %v578 = vpop.f32.mrf.mxu0
    %579 = vdwg.mxu0
    %v580 = vadd.f32 %v532, %v575
    %v581 = vxor.u32 %v580, 2147483648
    %v582 = vmul.f32 %v581, 1.442695
    %v583 = vpow.pop %v582
    %v584 = vadd.f32 %v583, 1.0
    %v585 = vrcp.pop %v584
    %v586 = vmul.f32 1.0, %v585
    %v587 = vtanh.pop %v580
    %v588 = vmul.f32 %v586, %v518
    %590 = vrot.lane.b32.xlu0 %v587, 64
    %v591 = vpop.permute.xlu0 %590
    %v593 = vmul.f32 %v586, %v591
    %595 = vrot.lane.b32.xlu0 %v593, 32
    %v596 = vpop.permute.xlu0 %595
    %v598 = vadd.f32 %v588, %v596
    %v599 = vtanh.pop %v598
    %601 = vrot.lane.b32.xlu0 %v599, 64
    %v602 = vpop.permute.xlu0 %601
    %v604 = vmul.f32 %v586, %v602
    %606 = vrot.lane.b32.xlu0 %v604, 32
    %v607 = vpop.permute.xlu0 %606
    %s609 = scalar_lea.vmem [#allocation2], 24
    %610 = vst.msk [vmem:[%s609] sm:$0xff] %vm297, %v607
    %s611 = scalar_lea.vmem [#allocation3], 32
    %v612 = vld [vmem:[%s611] sm:$0xff]
    %v613 = vpack.c.bf16 %v604, %v604
    %615 = vrot.lane.b32.xlu0 %v613, 32
    %v616 = vpop.permute.xlu0 %615
    %v618 = vsel %vm297, %v616, 0
    %620 = vmatprep.subr.bf16.mxu0 0
    %621 = vmatpush1.bf16.msra.mxu0 0
    %622 = vmatprep.subr.bf16.mxu0 0
    %623 = vmatpush1.bf16.msra.mxu0 0
    %624 = vmatprep.subr.bf16.mxu0 0
    %625 = vmatpush1.bf16.msra.mxu0 0
    %626 = vmatprep.subr.bf16.mxu0 0
    %627 = vmatpush1.bf16.msra.mxu0 0
    %628 = vmatprep.subr.bf16.mxu0 0
    %629 = vmatpush1.bf16.msra.mxu0 0
    %630 = vmatprep.subr.bf16.mxu0 0
    %631 = vmatpush1.bf16.msra.mxu0 0
    %632 = vmatprep.subr.bf16.mxu0 0
    %633 = vmatpush1.bf16.msra.mxu0 %v294
    %634 = vmatprep.subr.bf16.mxu0 0
    %635 = vmatpush1.bf16.msra.mxu0 %v293
    %636 = vmatprep.subr.bf16.mxu0 0
    %637 = vmatpush2.bf16.msra.mxu0 0
    %638 = vmatprep.subr.bf16.mxu0 0
    %639 = vmatpush2.bf16.msra.mxu0 0
    %640 = vmatprep.subr.bf16.mxu0 0
    %641 = vmatpush2.bf16.msra.mxu0 0
    %642 = vmatprep.subr.bf16.mxu0 0
    %643 = vmatpush2.bf16.msra.mxu0 0
    %644 = vmatprep.subr.bf16.mxu0 0
    %645 = vmatpush2.bf16.msra.mxu0 0
    %646 = vmatprep.subr.bf16.mxu0 0
    %647 = vmatpush2.bf16.msra.mxu0 0
    %648 = vmatprep.subr.bf16.mxu0 0
    %649 = vmatpush2.bf16.msra.mxu0 0
    %650 = vmatprep.subr.bf16.mxu0 0
    %651 = vmatpush2.bf16.msra.mxu0 0
    %652 = vmatprep.mubr.bf16.mxu0 0
    %653 = vmatmul.mubr.bf16.gmra.mxu0 %v618
    %v654 = vpop.f32.mrf.mxu0
    %v655 = vadd.f32 0.0, %v654
    %v656 = vpop.f32.mrf.mxu0
    %v657 = vpop.f32.mrf.mxu0
    %v658 = vpop.f32.mrf.mxu0
    %659 = vdwg.mxu0
    %v660 = vadd.f32 %v612, %v655
    %v661 = vxor.u32 %v660, 2147483648
    %v662 = vmul.f32 %v661, 1.442695
    %v663 = vpow.pop %v662
    %v664 = vadd.f32 %v663, 1.0
    %v665 = vrcp.pop %v664
    %v666 = vmul.f32 1.0, %v665
    %v667 = vtanh.pop %v660
    %v668 = vmul.f32 %v666, %v598
    %670 = vrot.lane.b32.xlu0 %v667, 64
    %v671 = vpop.permute.xlu0 %670
    %v673 = vmul.f32 %v666, %v671
    %675 = vrot.lane.b32.xlu0 %v673, 32
    %v676 = vpop.permute.xlu0 %675
    %v678 = vadd.f32 %v668, %v676
    %v679 = vtanh.pop %v678
    %681 = vrot.lane.b32.xlu0 %v679, 64
    %v682 = vpop.permute.xlu0 %681
    %v684 = vmul.f32 %v666, %v682
    %686 = vrot.lane.b32.xlu0 %v684, 32
    %v687 = vpop.permute.xlu0 %686
    %s689 = scalar_lea.vmem [#allocation2], 32
    %690 = vst.msk [vmem:[%s689] sm:$0xff] %vm297, %v687
    %s691 = scalar_lea.vmem [#allocation3], 40
    %v692 = vld [vmem:[%s691] sm:$0xff]
    %v693 = vpack.c.bf16 %v684, %v684
    %695 = vrot.lane.b32.xlu0 %v693, 32
    %v696 = vpop.permute.xlu0 %695
    %v698 = vsel %vm297, %v696, 0
    %700 = vmatprep.subr.bf16.mxu0 0
    %701 = vmatpush1.bf16.msra.mxu0 0
    %702 = vmatprep.subr.bf16.mxu0 0
    %703 = vmatpush1.bf16.msra.mxu0 0
    %704 = vmatprep.subr.bf16.mxu0 0
    %705 = vmatpush1.bf16.msra.mxu0 0
    %706 = vmatprep.subr.bf16.mxu0 0
    %707 = vmatpush1.bf16.msra.mxu0 0
    %708 = vmatprep.subr.bf16.mxu0 0
    %709 = vmatpush1.bf16.msra.mxu0 0
    %710 = vmatprep.subr.bf16.mxu0 0
    %711 = vmatpush1.bf16.msra.mxu0 0
    %712 = vmatprep.subr.bf16.mxu0 0
    %713 = vmatpush1.bf16.msra.mxu0 %v294
    %714 = vmatprep.subr.bf16.mxu0 0
    %715 = vmatpush1.bf16.msra.mxu0 %v293
    %716 = vmatprep.subr.bf16.mxu0 0
    %717 = vmatpush2.bf16.msra.mxu0 0
    %718 = vmatprep.subr.bf16.mxu0 0
    %719 = vmatpush2.bf16.msra.mxu0 0
    %720 = vmatprep.subr.bf16.mxu0 0
    %721 = vmatpush2.bf16.msra.mxu0 0
    %722 = vmatprep.subr.bf16.mxu0 0
    %723 = vmatpush2.bf16.msra.mxu0 0
    %724 = vmatprep.subr.bf16.mxu0 0
    %725 = vmatpush2.bf16.msra.mxu0 0
    %726 = vmatprep.subr.bf16.mxu0 0
    %727 = vmatpush2.bf16.msra.mxu0 0
    %728 = vmatprep.subr.bf16.mxu0 0
    %729 = vmatpush2.bf16.msra.mxu0 0
    %730 = vmatprep.subr.bf16.mxu0 0
    %731 = vmatpush2.bf16.msra.mxu0 0
    %732 = vmatprep.mubr.bf16.mxu0 0
    %733 = vmatmul.mubr.bf16.gmra.mxu0 %v698
    %v734 = vpop.f32.mrf.mxu0
    %v735 = vadd.f32 0.0, %v734
    %v736 = vpop.f32.mrf.mxu0
    %v737 = vpop.f32.mrf.mxu0
    %v738 = vpop.f32.mrf.mxu0
    %739 = vdwg.mxu0
    %v740 = vadd.f32 %v692, %v735
    %v741 = vxor.u32 %v740, 2147483648
    %v742 = vmul.f32 %v741, 1.442695
    %v743 = vpow.pop %v742
    %v744 = vadd.f32 %v743, 1.0
    %v745 = vrcp.pop %v744
    %v746 = vmul.f32 1.0, %v745
    %v747 = vtanh.pop %v740
    %v748 = vmul.f32 %v746, %v678
    %750 = vrot.lane.b32.xlu0 %v747, 64
    %v751 = vpop.permute.xlu0 %750
    %v753 = vmul.f32 %v746, %v751
    %755 = vrot.lane.b32.xlu0 %v753, 32
    %v756 = vpop.permute.xlu0 %755
    %v758 = vadd.f32 %v748, %v756
    %v759 = vtanh.pop %v758
    %761 = vrot.lane.b32.xlu0 %v759, 64
    %v762 = vpop.permute.xlu0 %761
    %v764 = vmul.f32 %v746, %v762
    %766 = vrot.lane.b32.xlu0 %v764, 32
    %v767 = vpop.permute.xlu0 %766
    %s769 = scalar_lea.vmem [#allocation2], 40
    %770 = vst.msk [vmem:[%s769] sm:$0xff] %vm297, %v767
    %s771 = scalar_lea.vmem [#allocation3], 48
    %v772 = vld [vmem:[%s771] sm:$0xff]
    %v773 = vpack.c.bf16 %v764, %v764
    %775 = vrot.lane.b32.xlu0 %v773, 32
    %v776 = vpop.permute.xlu0 %775
    %v778 = vsel %vm297, %v776, 0
    %780 = vmatprep.subr.bf16.mxu0 0
    %781 = vmatpush1.bf16.msra.mxu0 0
    %782 = vmatprep.subr.bf16.mxu0 0
    %783 = vmatpush1.bf16.msra.mxu0 0
    %784 = vmatprep.subr.bf16.mxu0 0
    %785 = vmatpush1.bf16.msra.mxu0 0
    %786 = vmatprep.subr.bf16.mxu0 0
    %787 = vmatpush1.bf16.msra.mxu0 0
    %788 = vmatprep.subr.bf16.mxu0 0
    %789 = vmatpush1.bf16.msra.mxu0 0
    %790 = vmatprep.subr.bf16.mxu0 0
    %791 = vmatpush1.bf16.msra.mxu0 0
    %792 = vmatprep.subr.bf16.mxu0 0
    %793 = vmatpush1.bf16.msra.mxu0 %v294
    %794 = vmatprep.subr.bf16.mxu0 0
    %795 = vmatpush1.bf16.msra.mxu0 %v293
    %796 = vmatprep.subr.bf16.mxu0 0
    %797 = vmatpush2.bf16.msra.mxu0 0
    %798 = vmatprep.subr.bf16.mxu0 0
    %799 = vmatpush2.bf16.msra.mxu0 0
    %800 = vmatprep.subr.bf16.mxu0 0
    %801 = vmatpush2.bf16.msra.mxu0 0
    %802 = vmatprep.subr.bf16.mxu0 0
    %803 = vmatpush2.bf16.msra.mxu0 0
    %804 = vmatprep.subr.bf16.mxu0 0
    %805 = vmatpush2.bf16.msra.mxu0 0
    %806 = vmatprep.subr.bf16.mxu0 0
    %807 = vmatpush2.bf16.msra.mxu0 0
    %808 = vmatprep.subr.bf16.mxu0 0
    %809 = vmatpush2.bf16.msra.mxu0 0
    %810 = vmatprep.subr.bf16.mxu0 0
    %811 = vmatpush2.bf16.msra.mxu0 0
    %812 = vmatprep.mubr.bf16.mxu0 0
    %813 = vmatmul.mubr.bf16.gmra.mxu0 %v778
    %v814 = vpop.f32.mrf.mxu0
    %v815 = vadd.f32 0.0, %v814
    %v816 = vpop.f32.mrf.mxu0
    %v817 = vpop.f32.mrf.mxu0
    %v818 = vpop.f32.mrf.mxu0
    %819 = vdwg.mxu0
    %v820 = vadd.f32 %v772, %v815
    %v821 = vxor.u32 %v820, 2147483648
    %v822 = vmul.f32 %v821, 1.442695
    %v823 = vpow.pop %v822
    %v824 = vadd.f32 %v823, 1.0
    %v825 = vrcp.pop %v824
    %v826 = vmul.f32 1.0, %v825
    %v827 = vtanh.pop %v820
    %v828 = vmul.f32 %v826, %v758
    %830 = vrot.lane.b32.xlu0 %v827, 64
    %v831 = vpop.permute.xlu0 %830
    %v833 = vmul.f32 %v826, %v831
    %835 = vrot.lane.b32.xlu0 %v833, 32
    %v836 = vpop.permute.xlu0 %835
    %v838 = vadd.f32 %v828, %v836
    %v839 = vtanh.pop %v838
    %841 = vrot.lane.b32.xlu0 %v839, 64
    %v842 = vpop.permute.xlu0 %841
    %v844 = vmul.f32 %v826, %v842
    %846 = vrot.lane.b32.xlu0 %v844, 32
    %v847 = vpop.permute.xlu0 %846
    %s849 = scalar_lea.vmem [#allocation2], 48
    %850 = vst.msk [vmem:[%s849] sm:$0xff] %vm297, %v847
    %s851 = scalar_lea.vmem [#allocation3], 56
    %v852 = vld [vmem:[%s851] sm:$0xff]
    %v853 = vpack.c.bf16 %v844, %v844
    %855 = vrot.lane.b32.xlu0 %v853, 32
    %v856 = vpop.permute.xlu0 %855
    %v858 = vsel %vm297, %v856, 0
    %860 = vmatprep.subr.bf16.mxu0 0
    %861 = vmatpush1.bf16.msra.mxu0 0
    %862 = vmatprep.subr.bf16.mxu0 0
    %863 = vmatpush1.bf16.msra.mxu0 0
    %864 = vmatprep.subr.bf16.mxu0 0
    %865 = vmatpush1.bf16.msra.mxu0 0
    %866 = vmatprep.subr.bf16.mxu0 0
    %867 = vmatpush1.bf16.msra.mxu0 0
    %868 = vmatprep.subr.bf16.mxu0 0
    %869 = vmatpush1.bf16.msra.mxu0 0
    %870 = vmatprep.subr.bf16.mxu0 0
    %871 = vmatpush1.bf16.msra.mxu0 0
    %872 = vmatprep.subr.bf16.mxu0 0
    %873 = vmatpush1.bf16.msra.mxu0 %v294
    %874 = vmatprep.subr.bf16.mxu0 0
    %875 = vmatpush1.bf16.msra.mxu0 %v293
    %876 = vmatprep.subr.bf16.mxu0 0
    %877 = vmatpush2.bf16.msra.mxu0 0
    %878 = vmatprep.subr.bf16.mxu0 0
    %879 = vmatpush2.bf16.msra.mxu0 0
    %880 = vmatprep.subr.bf16.mxu0 0
    %881 = vmatpush2.bf16.msra.mxu0 0
    %882 = vmatprep.subr.bf16.mxu0 0
    %883 = vmatpush2.bf16.msra.mxu0 0
    %884 = vmatprep.subr.bf16.mxu0 0
    %885 = vmatpush2.bf16.msra.mxu0 0
    %886 = vmatprep.subr.bf16.mxu0 0
    %887 = vmatpush2.bf16.msra.mxu0 0
    %888 = vmatprep.subr.bf16.mxu0 0
    %889 = vmatpush2.bf16.msra.mxu0 0
    %890 = vmatprep.subr.bf16.mxu0 0
    %891 = vmatpush2.bf16.msra.mxu0 0
    %892 = vmatprep.mubr.bf16.mxu0 0
    %893 = vmatmul.mubr.bf16.gmra.mxu0 %v858
    %v894 = vpop.f32.mrf.mxu0
    %v895 = vadd.f32 0.0, %v894
    %v896 = vpop.f32.mrf.mxu0
    %v897 = vpop.f32.mrf.mxu0
    %v898 = vpop.f32.mrf.mxu0
    %899 = vdwg.mxu0
    %v900 = vadd.f32 %v852, %v895
    %v901 = vxor.u32 %v900, 2147483648
    %v902 = vmul.f32 %v901, 1.442695
    %v903 = vpow.pop %v902
    %v904 = vadd.f32 %v903, 1.0
    %v905 = vrcp.pop %v904
    %v906 = vmul.f32 1.0, %v905
    %v907 = vtanh.pop %v900
    %v908 = vmul.f32 %v906, %v838
    %910 = vrot.lane.b32.xlu0 %v907, 64
    %v911 = vpop.permute.xlu0 %910
    %v913 = vmul.f32 %v906, %v911
    %915 = vrot.lane.b32.xlu0 %v913, 32
    %v916 = vpop.permute.xlu0 %915
    %v918 = vadd.f32 %v908, %v916
    %v919 = vtanh.pop %v918
    %921 = vrot.lane.b32.xlu0 %v919, 64
    %v922 = vpop.permute.xlu0 %921
    %v924 = vmul.f32 %v906, %v922
    %926 = vrot.lane.b32.xlu0 %v924, 32
    %v927 = vpop.permute.xlu0 %926
    %s929 = scalar_lea.vmem [#allocation2], 56
    %930 = vst.msk [vmem:[%s929] sm:$0xff] %vm297, %v927
    %v931 = vld [vmem:[%s4] sm:$0xf]
    %v932 = vld [vmem:[%s4 + $0x4] sm:$0xf]
    %v933 = vld [vmem:[%s4 + $0x8] sm:$0xf]
    %v934 = vld [vmem:[%s4 + $0xc] sm:$0xf]
    %v935 = vld [vmem:[%s5] sm:$0xf]
    %v936 = vld [vmem:[%s5 + $0x4] sm:$0xf]
    %v937 = vld [vmem:[%s5 + $0x8] sm:$0xf]
    %v938 = vld [vmem:[%s5 + $0xc] sm:$0xf]
    %v939 = vld [vmem:[%s6] sm:$0x1]
    %v940 = vld [vmem:[#allocation2] sm:$0xff]
    %v941 = vld [vmem:[#allocation2 + $0x8] sm:$0xff]
    %v942 = vld [vmem:[#allocation2 + $0x10] sm:$0xff]
    %v943 = vld [vmem:[#allocation2 + $0x18] sm:$0xff]
    %v944 = vld [vmem:[#allocation2 + $0x20] sm:$0xff]
    %v945 = vld [vmem:[#allocation2 + $0x28] sm:$0xff]
    %v946 = vld [vmem:[#allocation2 + $0x30] sm:$0xff]
    %v947 = vld [vmem:[#allocation2 + $0x38] sm:$0xff]
    %v948 = vpack.c.bf16 %v941, %v940
    %v949 = vpack.c.bf16 %v943, %v942
    %v950 = vpack.c.bf16 %v945, %v944
    %v951 = vpack.c.bf16 %v947, %v946
    %v953 = vlaneseq
    %v954 = vshrl.u32 %v953, 7
    %v955 = vsub.s32 0, %v954
    %v956 = vrot.slane %v939, %v955
    %v962 = vunpack.c.l.b16 %v931
    %v963 = vunpack.c.l.b16 %v932
    %v964 = vunpack.c.l.b16 %v933
    %v965 = vunpack.c.l.b16 %v934
    %v966 = vpack.c.b16 %v963, %v962
    %v967 = vpack.c.b16 %v965, %v964
    %v971 = vsel %vm297, %v948, 0
    %v974 = vsel %vm297, %v949, 0
    %v977 = vsel %vm297, %v950, 0
    %v980 = vsel %vm297, %v951, 0
    %982 = vmatprep.subr.bf16.mxu0 0
    %983 = vmatpush1.bf16.msra.mxu0 0
    %984 = vmatprep.subr.bf16.mxu0 0
    %985 = vmatpush1.bf16.msra.mxu0 0
    %986 = vmatprep.subr.bf16.mxu0 0
    %987 = vmatpush1.bf16.msra.mxu0 0
    %988 = vmatprep.subr.bf16.mxu0 0
    %989 = vmatpush1.bf16.msra.mxu0 0
    %990 = vmatprep.subr.bf16.mxu0 0
    %991 = vmatpush1.bf16.msra.mxu0 0
    %992 = vmatprep.subr.bf16.mxu0 0
    %993 = vmatpush1.bf16.msra.mxu0 0
    %994 = vmatprep.subr.bf16.mxu0 0
    %995 = vmatpush1.bf16.msra.mxu0 %v967
    %996 = vmatprep.subr.bf16.mxu0 0
    %997 = vmatpush1.bf16.msra.mxu0 %v966
    %998 = vmatprep.subr.bf16.mxu0 0
    %999 = vmatpush2.bf16.msra.mxu0 0
    %1000 = vmatprep.subr.bf16.mxu0 0
    %1001 = vmatpush2.bf16.msra.mxu0 0
    %1002 = vmatprep.subr.bf16.mxu0 0
    %1003 = vmatpush2.bf16.msra.mxu0 0
    %1004 = vmatprep.subr.bf16.mxu0 0
    %1005 = vmatpush2.bf16.msra.mxu0 0
    %1006 = vmatprep.subr.bf16.mxu0 0
    %1007 = vmatpush2.bf16.msra.mxu0 0
    %1008 = vmatprep.subr.bf16.mxu0 0
    %1009 = vmatpush2.bf16.msra.mxu0 0
    %1010 = vmatprep.subr.bf16.mxu0 0
    %1011 = vmatpush2.bf16.msra.mxu0 0
    %1012 = vmatprep.subr.bf16.mxu0 0
    %1013 = vmatpush2.bf16.msra.mxu0 0
    %1014 = vmatprep.mubr.bf16.mxu0 0
    %1015 = vmatmul.mubr.bf16.gmra.mxu0 %v971
    %v1016 = vpop.f32.mrf.mxu0
    %v1017 = vadd.f32 %v956, %v1016
    %v1018 = vpop.f32.mrf.mxu0
    %v1019 = vpop.f32.mrf.mxu0
    %v1020 = vadd.f32 %v956, %v1019
    %v1021 = vpop.f32.mrf.mxu0
    %1022 = vmatprep.mubr.bf16.mxu0 0
    %1023 = vmatmul.mubr.bf16.gmra.mxu0 %v974
    %v1024 = vpop.f32.mrf.mxu0
    %v1025 = vadd.f32 %v956, %v1024
    %v1026 = vpop.f32.mrf.mxu0
    %v1027 = vpop.f32.mrf.mxu0
    %v1028 = vadd.f32 %v956, %v1027
    %v1029 = vpop.f32.mrf.mxu0
    %1030 = vmatprep.mubr.bf16.mxu0 0
    %1031 = vmatmul.mubr.bf16.gmra.mxu0 %v977
    %v1032 = vpop.f32.mrf.mxu0
    %v1033 = vadd.f32 %v956, %v1032
    %v1034 = vpop.f32.mrf.mxu0
    %v1035 = vpop.f32.mrf.mxu0
    %v1036 = vadd.f32 %v956, %v1035
    %v1037 = vpop.f32.mrf.mxu0
    %1038 = vmatprep.mubr.bf16.mxu0 0
    %1039 = vmatmul.mubr.bf16.gmra.mxu0 %v980
    %v1040 = vpop.f32.mrf.mxu0
    %v1041 = vadd.f32 %v956, %v1040
    %v1042 = vpop.f32.mrf.mxu0
    %v1043 = vpop.f32.mrf.mxu0
    %v1044 = vadd.f32 %v956, %v1043
    %v1045 = vpop.f32.mrf.mxu0
    %1046 = vdwg.mxu0
    %1047 = vst [vmem:[#allocation3] sm:$0xff] %v1017
    %1048 = vst [vmem:[#allocation3 + $0x8] sm:$0xff] %v1020
    %1049 = vst [vmem:[#allocation3 + $0x10] sm:$0xff] %v1025
    %1050 = vst [vmem:[#allocation3 + $0x18] sm:$0xff] %v1028
    %1051 = vst [vmem:[#allocation3 + $0x20] sm:$0xff] %v1033
    %1052 = vst [vmem:[#allocation3 + $0x28] sm:$0xff] %v1036
    %1053 = vst [vmem:[#allocation3 + $0x30] sm:$0xff] %v1041
    %1054 = vst [vmem:[#allocation3 + $0x38] sm:$0xff] %v1044
    %v1055 = vld [vmem:[#allocation3] sm:$0xff]
    %v1060 = vunpack.c.l.b16 %v935
    %v1061 = vunpack.c.l.b16 %v936
    %v1062 = vunpack.c.l.b16 %v937
    %v1063 = vunpack.c.l.b16 %v938
    %v1064 = vpack.c.b16 %v1061, %v1060
    %v1065 = vpack.c.b16 %v1063, %v1062
    %1068 = vmatprep.subr.bf16.mxu0 0
    %1069 = vmatpush1.bf16.msra.mxu0 0
    %1070 = vmatprep.subr.bf16.mxu0 0
    %1071 = vmatpush1.bf16.msra.mxu0 0
    %1072 = vmatprep.subr.bf16.mxu0 0
    %1073 = vmatpush1.bf16.msra.mxu0 0
    %1074 = vmatprep.subr.bf16.mxu0 0
    %1075 = vmatpush1.bf16.msra.mxu0 0
    %1076 = vmatprep.subr.bf16.mxu0 0
    %1077 = vmatpush1.bf16.msra.mxu0 0
    %1078 = vmatprep.subr.bf16.mxu0 0
    %1079 = vmatpush1.bf16.msra.mxu0 0
    %1080 = vmatprep.subr.bf16.mxu0 0
    %1081 = vmatpush1.bf16.msra.mxu0 %v1065
    %1082 = vmatprep.subr.bf16.mxu0 0
    %1083 = vmatpush1.bf16.msra.mxu0 %v1064
    %1084 = vmatprep.subr.bf16.mxu0 0
    %1085 = vmatpush2.bf16.msra.mxu0 0
    %1086 = vmatprep.subr.bf16.mxu0 0
    %1087 = vmatpush2.bf16.msra.mxu0 0
    %1088 = vmatprep.subr.bf16.mxu0 0
    %1089 = vmatpush2.bf16.msra.mxu0 0
    %1090 = vmatprep.subr.bf16.mxu0 0
    %1091 = vmatpush2.bf16.msra.mxu0 0
    %1092 = vmatprep.subr.bf16.mxu0 0
    %1093 = vmatpush2.bf16.msra.mxu0 0
    %1094 = vmatprep.subr.bf16.mxu0 0
    %1095 = vmatpush2.bf16.msra.mxu0 0
    %1096 = vmatprep.subr.bf16.mxu0 0
    %1097 = vmatpush2.bf16.msra.mxu0 0
    %1098 = vmatprep.subr.bf16.mxu0 0
    %1099 = vmatpush2.bf16.msra.mxu0 0
    %1100 = vmatprep.mubr.bf16.mxu0 0
    %1101 = vmatmul.mubr.bf16.gmra.mxu0 %v299
    %v1102 = vpop.f32.mrf.mxu0
    %v1103 = vadd.f32 0.0, %v1102
    %v1104 = vpop.f32.mrf.mxu0
    %v1105 = vpop.f32.mrf.mxu0
    %v1106 = vpop.f32.mrf.mxu0
    %1107 = vdwg.mxu0
    %v1108 = vadd.f32 %v1055, %v1103
    %v1109 = vxor.u32 %v1108, 2147483648
    %v1110 = vmul.f32 %v1109, 1.442695
    %v1111 = vpow.pop %v1110
    %v1112 = vadd.f32 %v1111, 1.0
    %v1113 = vrcp.pop %v1112
    %v1114 = vmul.f32 1.0, %v1113
    %v1115 = vtanh.pop %v1108
    %v1116 = vmul.f32 %v1114, 0.0
    %1118 = vrot.lane.b32.xlu0 %v1115, 64
    %v1119 = vpop.permute.xlu0 %1118
    %v1121 = vmul.f32 %v1114, %v1119
    %1123 = vrot.lane.b32.xlu0 %v1121, 32
    %v1124 = vpop.permute.xlu0 %1123
    %v1126 = vadd.f32 %v1116, %v1124
    %v1127 = vtanh.pop %v1126
    %1129 = vrot.lane.b32.xlu0 %v1127, 64
    %v1130 = vpop.permute.xlu0 %1129
    %v1132 = vmul.f32 %v1114, %v1130
    %v1133 = vld [vmem:[%s371] sm:$0xff]
    %v1134 = vpack.c.bf16 %v1132, %v1132
    %1136 = vrot.lane.b32.xlu0 %v1134, 32
    %v1137 = vpop.permute.xlu0 %1136
    %v1139 = vsel %vm297, %v1137, 0
    %1141 = vmatprep.subr.bf16.mxu0 0
    %1142 = vmatpush1.bf16.msra.mxu0 0
    %1143 = vmatprep.subr.bf16.mxu0 0
    %1144 = vmatpush1.bf16.msra.mxu0 0
    %1145 = vmatprep.subr.bf16.mxu0 0
    %1146 = vmatpush1.bf16.msra.mxu0 0
    %1147 = vmatprep.subr.bf16.mxu0 0
    %1148 = vmatpush1.bf16.msra.mxu0 0
    %1149 = vmatprep.subr.bf16.mxu0 0
    %1150 = vmatpush1.bf16.msra.mxu0 0
    %1151 = vmatprep.subr.bf16.mxu0 0
    %1152 = vmatpush1.bf16.msra.mxu0 0
    %1153 = vmatprep.subr.bf16.mxu0 0
    %1154 = vmatpush1.bf16.msra.mxu0 %v1065
    %1155 = vmatprep.subr.bf16.mxu0 0
    %1156 = vmatpush1.bf16.msra.mxu0 %v1064
    %1157 = vmatprep.subr.bf16.mxu0 0
    %1158 = vmatpush2.bf16.msra.mxu0 0
    %1159 = vmatprep.subr.bf16.mxu0 0
    %1160 = vmatpush2.bf16.msra.mxu0 0
    %1161 = vmatprep.subr.bf16.mxu0 0
    %1162 = vmatpush2.bf16.msra.mxu0 0
    %1163 = vmatprep.subr.bf16.mxu0 0
    %1164 = vmatpush2.bf16.msra.mxu0 0
    %1165 = vmatprep.subr.bf16.mxu0 0
    %1166 = vmatpush2.bf16.msra.mxu0 0
    %1167 = vmatprep.subr.bf16.mxu0 0
    %1168 = vmatpush2.bf16.msra.mxu0 0
    %1169 = vmatprep.subr.bf16.mxu0 0
    %1170 = vmatpush2.bf16.msra.mxu0 0
    %1171 = vmatprep.subr.bf16.mxu0 0
    %1172 = vmatpush2.bf16.msra.mxu0 0
    %1173 = vmatprep.mubr.bf16.mxu0 0
    %1174 = vmatmul.mubr.bf16.gmra.mxu0 %v1139
    %v1175 = vpop.f32.mrf.mxu0
    %v1176 = vadd.f32 0.0, %v1175
    %v1177 = vpop.f32.mrf.mxu0
    %v1178 = vpop.f32.mrf.mxu0
    %v1179 = vpop.f32.mrf.mxu0
    %1180 = vdwg.mxu0
    %v1181 = vadd.f32 %v1133, %v1176
    %v1182 = vxor.u32 %v1181, 2147483648
    %v1183 = vmul.f32 %v1182, 1.442695
    %v1184 = vpow.pop %v1183
    %v1185 = vadd.f32 %v1184, 1.0
    %v1186 = vrcp.pop %v1185
    %v1187 = vmul.f32 1.0, %v1186
    %v1188 = vtanh.pop %v1181
    %v1189 = vmul.f32 %v1187, %v1126
    %1191 = vrot.lane.b32.xlu0 %v1188, 64
    %v1192 = vpop.permute.xlu0 %1191
    %v1194 = vmul.f32 %v1187, %v1192
    %1196 = vrot.lane.b32.xlu0 %v1194, 32
    %v1197 = vpop.permute.xlu0 %1196
    %v1199 = vadd.f32 %v1189, %v1197
    %v1200 = vtanh.pop %v1199
    %1202 = vrot.lane.b32.xlu0 %v1200, 64
    %v1203 = vpop.permute.xlu0 %1202
    %v1205 = vmul.f32 %v1187, %v1203
    %v1206 = vld [vmem:[%s451] sm:$0xff]
    %v1207 = vpack.c.bf16 %v1205, %v1205
    %1209 = vrot.lane.b32.xlu0 %v1207, 32
    %v1210 = vpop.permute.xlu0 %1209
    %v1212 = vsel %vm297, %v1210, 0
    %1214 = vmatprep.subr.bf16.mxu0 0
    %1215 = vmatpush1.bf16.msra.mxu0 0
    %1216 = vmatprep.subr.bf16.mxu0 0
    %1217 = vmatpush1.bf16.msra.mxu0 0
    %1218 = vmatprep.subr.bf16.mxu0 0
    %1219 = vmatpush1.bf16.msra.mxu0 0
    %1220 = vmatprep.subr.bf16.mxu0 0
    %1221 = vmatpush1.bf16.msra.mxu0 0
    %1222 = vmatprep.subr.bf16.mxu0 0
    %1223 = vmatpush1.bf16.msra.mxu0 0
    %1224 = vmatprep.subr.bf16.mxu0 0
    %1225 = vmatpush1.bf16.msra.mxu0 0
    %1226 = vmatprep.subr.bf16.mxu0 0
    %1227 = vmatpush1.bf16.msra.mxu0 %v1065
    %1228 = vmatprep.subr.bf16.mxu0 0
    %1229 = vmatpush1.bf16.msra.mxu0 %v1064
    %1230 = vmatprep.subr.bf16.mxu0 0
    %1231 = vmatpush2.bf16.msra.mxu0 0
    %1232 = vmatprep.subr.bf16.mxu0 0
    %1233 = vmatpush2.bf16.msra.mxu0 0
    %1234 = vmatprep.subr.bf16.mxu0 0
    %1235 = vmatpush2.bf16.msra.mxu0 0
    %1236 = vmatprep.subr.bf16.mxu0 0
    %1237 = vmatpush2.bf16.msra.mxu0 0
    %1238 = vmatprep.subr.bf16.mxu0 0
    %1239 = vmatpush2.bf16.msra.mxu0 0
    %1240 = vmatprep.subr.bf16.mxu0 0
    %1241 = vmatpush2.bf16.msra.mxu0 0
    %1242 = vmatprep.subr.bf16.mxu0 0
    %1243 = vmatpush2.bf16.msra.mxu0 0
    %1244 = vmatprep.subr.bf16.mxu0 0
    %1245 = vmatpush2.bf16.msra.mxu0 0
    %1246 = vmatprep.mubr.bf16.mxu0 0
    %1247 = vmatmul.mubr.bf16.gmra.mxu0 %v1212
    %v1248 = vpop.f32.mrf.mxu0
    %v1249 = vadd.f32 0.0, %v1248
    %v1250 = vpop.f32.mrf.mxu0
    %v1251 = vpop.f32.mrf.mxu0
    %v1252 = vpop.f32.mrf.mxu0
    %1253 = vdwg.mxu0
    %v1254 = vadd.f32 %v1206, %v1249
    %v1255 = vxor.u32 %v1254, 2147483648
    %v1256 = vmul.f32 %v1255, 1.442695
    %v1257 = vpow.pop %v1256
    %v1258 = vadd.f32 %v1257, 1.0
    %v1259 = vrcp.pop %v1258
    %v1260 = vmul.f32 1.0, %v1259
    %v1261 = vtanh.pop %v1254
    %v1262 = vmul.f32 %v1260, %v1199
    %1264 = vrot.lane.b32.xlu0 %v1261, 64
    %v1265 = vpop.permute.xlu0 %1264
    %v1267 = vmul.f32 %v1260, %v1265
    %1269 = vrot.lane.b32.xlu0 %v1267, 32
    %v1270 = vpop.permute.xlu0 %1269
    %v1272 = vadd.f32 %v1262, %v1270
    %v1273 = vtanh.pop %v1272
    %1275 = vrot.lane.b32.xlu0 %v1273, 64
    %v1276 = vpop.permute.xlu0 %1275
    %v1278 = vmul.f32 %v1260, %v1276
    %v1279 = vld [vmem:[%s531] sm:$0xff]
    %v1280 = vpack.c.bf16 %v1278, %v1278
    %1282 = vrot.lane.b32.xlu0 %v1280, 32
    %v1283 = vpop.permute.xlu0 %1282
    %v1285 = vsel %vm297, %v1283, 0
    %1287 = vmatprep.subr.bf16.mxu0 0
    %1288 = vmatpush1.bf16.msra.mxu0 0
    %1289 = vmatprep.subr.bf16.mxu0 0
    %1290 = vmatpush1.bf16.msra.mxu0 0
    %1291 = vmatprep.subr.bf16.mxu0 0
    %1292 = vmatpush1.bf16.msra.mxu0 0
    %1293 = vmatprep.subr.bf16.mxu0 0
    %1294 = vmatpush1.bf16.msra.mxu0 0
    %1295 = vmatprep.subr.bf16.mxu0 0
    %1296 = vmatpush1.bf16.msra.mxu0 0
    %1297 = vmatprep.subr.bf16.mxu0 0
    %1298 = vmatpush1.bf16.msra.mxu0 0
    %1299 = vmatprep.subr.bf16.mxu0 0
    %1300 = vmatpush1.bf16.msra.mxu0 %v1065
    %1301 = vmatprep.subr.bf16.mxu0 0
    %1302 = vmatpush1.bf16.msra.mxu0 %v1064
    %1303 = vmatprep.subr.bf16.mxu0 0
    %1304 = vmatpush2.bf16.msra.mxu0 0
    %1305 = vmatprep.subr.bf16.mxu0 0
    %1306 = vmatpush2.bf16.msra.mxu0 0
    %1307 = vmatprep.subr.bf16.mxu0 0
    %1308 = vmatpush2.bf16.msra.mxu0 0
    %1309 = vmatprep.subr.bf16.mxu0 0
    %1310 = vmatpush2.bf16.msra.mxu0 0
    %1311 = vmatprep.subr.bf16.mxu0 0
    %1312 = vmatpush2.bf16.msra.mxu0 0
    %1313 = vmatprep.subr.bf16.mxu0 0
    %1314 = vmatpush2.bf16.msra.mxu0 0
    %1315 = vmatprep.subr.bf16.mxu0 0
    %1316 = vmatpush2.bf16.msra.mxu0 0
    %1317 = vmatprep.subr.bf16.mxu0 0
    %1318 = vmatpush2.bf16.msra.mxu0 0
    %1319 = vmatprep.mubr.bf16.mxu0 0
    %1320 = vmatmul.mubr.bf16.gmra.mxu0 %v1285
    %v1321 = vpop.f32.mrf.mxu0
    %v1322 = vadd.f32 0.0, %v1321
    %v1323 = vpop.f32.mrf.mxu0
    %v1324 = vpop.f32.mrf.mxu0
    %v1325 = vpop.f32.mrf.mxu0
    %1326 = vdwg.mxu0
    %v1327 = vadd.f32 %v1279, %v1322
    %v1328 = vxor.u32 %v1327, 2147483648
    %v1329 = vmul.f32 %v1328, 1.442695
    %v1330 = vpow.pop %v1329
    %v1331 = vadd.f32 %v1330, 1.0
    %v1332 = vrcp.pop %v1331
    %v1333 = vmul.f32 1.0, %v1332
    %v1334 = vtanh.pop %v1327
    %v1335 = vmul.f32 %v1333, %v1272
    %1337 = vrot.lane.b32.xlu0 %v1334, 64
    %v1338 = vpop.permute.xlu0 %1337
    %v1340 = vmul.f32 %v1333, %v1338
    %1342 = vrot.lane.b32.xlu0 %v1340, 32
    %v1343 = vpop.permute.xlu0 %1342
    %v1345 = vadd.f32 %v1335, %v1343
    %v1346 = vtanh.pop %v1345
    %1348 = vrot.lane.b32.xlu0 %v1346, 64
    %v1349 = vpop.permute.xlu0 %1348
    %v1351 = vmul.f32 %v1333, %v1349
    %v1352 = vld [vmem:[%s611] sm:$0xff]
    %v1353 = vpack.c.bf16 %v1351, %v1351
    %1355 = vrot.lane.b32.xlu0 %v1353, 32
    %v1356 = vpop.permute.xlu0 %1355
    %v1358 = vsel %vm297, %v1356, 0
    %1360 = vmatprep.subr.bf16.mxu0 0
    %1361 = vmatpush1.bf16.msra.mxu0 0
    %1362 = vmatprep.subr.bf16.mxu0 0
    %1363 = vmatpush1.bf16.msra.mxu0 0
    %1364 = vmatprep.subr.bf16.mxu0 0
    %1365 = vmatpush1.bf16.msra.mxu0 0
    %1366 = vmatprep.subr.bf16.mxu0 0
    %1367 = vmatpush1.bf16.msra.mxu0 0
    %1368 = vmatprep.subr.bf16.mxu0 0
    %1369 = vmatpush1.bf16.msra.mxu0 0
    %1370 = vmatprep.subr.bf16.mxu0 0
    %1371 = vmatpush1.bf16.msra.mxu0 0
    %1372 = vmatprep.subr.bf16.mxu0 0
    %1373 = vmatpush1.bf16.msra.mxu0 %v1065
    %1374 = vmatprep.subr.bf16.mxu0 0
    %1375 = vmatpush1.bf16.msra.mxu0 %v1064
    %1376 = vmatprep.subr.bf16.mxu0 0
    %1377 = vmatpush2.bf16.msra.mxu0 0
    %1378 = vmatprep.subr.bf16.mxu0 0
    %1379 = vmatpush2.bf16.msra.mxu0 0
    %1380 = vmatprep.subr.bf16.mxu0 0
    %1381 = vmatpush2.bf16.msra.mxu0 0
    %1382 = vmatprep.subr.bf16.mxu0 0
    %1383 = vmatpush2.bf16.msra.mxu0 0
    %1384 = vmatprep.subr.bf16.mxu0 0
    %1385 = vmatpush2.bf16.msra.mxu0 0
    %1386 = vmatprep.subr.bf16.mxu0 0
    %1387 = vmatpush2.bf16.msra.mxu0 0
    %1388 = vmatprep.subr.bf16.mxu0 0
    %1389 = vmatpush2.bf16.msra.mxu0 0
    %1390 = vmatprep.subr.bf16.mxu0 0
    %1391 = vmatpush2.bf16.msra.mxu0 0
    %1392 = vmatprep.mubr.bf16.mxu0 0
    %1393 = vmatmul.mubr.bf16.gmra.mxu0 %v1358
    %v1394 = vpop.f32.mrf.mxu0
    %v1395 = vadd.f32 0.0, %v1394
    %v1396 = vpop.f32.mrf.mxu0
    %v1397 = vpop.f32.mrf.mxu0
    %v1398 = vpop.f32.mrf.mxu0
    %1399 = vdwg.mxu0
    %v1400 = vadd.f32 %v1352, %v1395
    %v1401 = vxor.u32 %v1400, 2147483648
    %v1402 = vmul.f32 %v1401, 1.442695
    %v1403 = vpow.pop %v1402
    %v1404 = vadd.f32 %v1403, 1.0
    %v1405 = vrcp.pop %v1404
    %v1406 = vmul.f32 1.0, %v1405
    %v1407 = vtanh.pop %v1400
    %v1408 = vmul.f32 %v1406, %v1345
    %1410 = vrot.lane.b32.xlu0 %v1407, 64
    %v1411 = vpop.permute.xlu0 %1410
    %v1413 = vmul.f32 %v1406, %v1411
    %1415 = vrot.lane.b32.xlu0 %v1413, 32
    %v1416 = vpop.permute.xlu0 %1415
    %v1418 = vadd.f32 %v1408, %v1416
    %v1419 = vtanh.pop %v1418
    %1421 = vrot.lane.b32.xlu0 %v1419, 64
    %v1422 = vpop.permute.xlu0 %1421
    %v1424 = vmul.f32 %v1406, %v1422
    %v1425 = vld [vmem:[%s691] sm:$0xff]
    %v1426 = vpack.c.bf16 %v1424, %v1424
    %1428 = vrot.lane.b32.xlu0 %v1426, 32
    %v1429 = vpop.permute.xlu0 %1428
    %v1431 = vsel %vm297, %v1429, 0
    %1433 = vmatprep.subr.bf16.mxu0 0
    %1434 = vmatpush1.bf16.msra.mxu0 0
    %1435 = vmatprep.subr.bf16.mxu0 0
    %1436 = vmatpush1.bf16.msra.mxu0 0
    %1437 = vmatprep.subr.bf16.mxu0 0
    %1438 = vmatpush1.bf16.msra.mxu0 0
    %1439 = vmatprep.subr.bf16.mxu0 0
    %1440 = vmatpush1.bf16.msra.mxu0 0
    %1441 = vmatprep.subr.bf16.mxu0 0
    %1442 = vmatpush1.bf16.msra.mxu0 0
    %1443 = vmatprep.subr.bf16.mxu0 0
    %1444 = vmatpush1.bf16.msra.mxu0 0
    %1445 = vmatprep.subr.bf16.mxu0 0
    %1446 = vmatpush1.bf16.msra.mxu0 %v1065
    %1447 = vmatprep.subr.bf16.mxu0 0
    %1448 = vmatpush1.bf16.msra.mxu0 %v1064
    %1449 = vmatprep.subr.bf16.mxu0 0
    %1450 = vmatpush2.bf16.msra.mxu0 0
    %1451 = vmatprep.subr.bf16.mxu0 0
    %1452 = vmatpush2.bf16.msra.mxu0 0
    %1453 = vmatprep.subr.bf16.mxu0 0
    %1454 = vmatpush2.bf16.msra.mxu0 0
    %1455 = vmatprep.subr.bf16.mxu0 0
    %1456 = vmatpush2.bf16.msra.mxu0 0
    %1457 = vmatprep.subr.bf16.mxu0 0
    %1458 = vmatpush2.bf16.msra.mxu0 0
    %1459 = vmatprep.subr.bf16.mxu0 0
    %1460 = vmatpush2.bf16.msra.mxu0 0
    %1461 = vmatprep.subr.bf16.mxu0 0
    %1462 = vmatpush2.bf16.msra.mxu0 0
    %1463 = vmatprep.subr.bf16.mxu0 0
    %1464 = vmatpush2.bf16.msra.mxu0 0
    %1465 = vmatprep.mubr.bf16.mxu0 0
    %1466 = vmatmul.mubr.bf16.gmra.mxu0 %v1431
    %v1467 = vpop.f32.mrf.mxu0
    %v1468 = vadd.f32 0.0, %v1467
    %v1469 = vpop.f32.mrf.mxu0
    %v1470 = vpop.f32.mrf.mxu0
    %v1471 = vpop.f32.mrf.mxu0
    %1472 = vdwg.mxu0
    %v1473 = vadd.f32 %v1425, %v1468
    %v1474 = vxor.u32 %v1473, 2147483648
    %v1475 = vmul.f32 %v1474, 1.442695
    %v1476 = vpow.pop %v1475
    %v1477 = vadd.f32 %v1476, 1.0
    %v1478 = vrcp.pop %v1477
    %v1479 = vmul.f32 1.0, %v1478
    %v1480 = vtanh.pop %v1473
    %v1481 = vmul.f32 %v1479, %v1418
    %1483 = vrot.lane.b32.xlu0 %v1480, 64
    %v1484 = vpop.permute.xlu0 %1483
    %v1486 = vmul.f32 %v1479, %v1484
    %1488 = vrot.lane.b32.xlu0 %v1486, 32
    %v1489 = vpop.permute.xlu0 %1488
    %v1491 = vadd.f32 %v1481, %v1489
    %v1492 = vtanh.pop %v1491
    %1494 = vrot.lane.b32.xlu0 %v1492, 64
    %v1495 = vpop.permute.xlu0 %1494
    %v1497 = vmul.f32 %v1479, %v1495
    %v1498 = vld [vmem:[%s771] sm:$0xff]
    %v1499 = vpack.c.bf16 %v1497, %v1497
    %1501 = vrot.lane.b32.xlu0 %v1499, 32
    %v1502 = vpop.permute.xlu0 %1501
    %v1504 = vsel %vm297, %v1502, 0
    %1506 = vmatprep.subr.bf16.mxu0 0
    %1507 = vmatpush1.bf16.msra.mxu0 0
    %1508 = vmatprep.subr.bf16.mxu0 0
    %1509 = vmatpush1.bf16.msra.mxu0 0
    %1510 = vmatprep.subr.bf16.mxu0 0
    %1511 = vmatpush1.bf16.msra.mxu0 0
    %1512 = vmatprep.subr.bf16.mxu0 0
    %1513 = vmatpush1.bf16.msra.mxu0 0
    %1514 = vmatprep.subr.bf16.mxu0 0
    %1515 = vmatpush1.bf16.msra.mxu0 0
    %1516 = vmatprep.subr.bf16.mxu0 0
    %1517 = vmatpush1.bf16.msra.mxu0 0
    %1518 = vmatprep.subr.bf16.mxu0 0
    %1519 = vmatpush1.bf16.msra.mxu0 %v1065
    %1520 = vmatprep.subr.bf16.mxu0 0
    %1521 = vmatpush1.bf16.msra.mxu0 %v1064
    %1522 = vmatprep.subr.bf16.mxu0 0
    %1523 = vmatpush2.bf16.msra.mxu0 0
    %1524 = vmatprep.subr.bf16.mxu0 0
    %1525 = vmatpush2.bf16.msra.mxu0 0
    %1526 = vmatprep.subr.bf16.mxu0 0
    %1527 = vmatpush2.bf16.msra.mxu0 0
    %1528 = vmatprep.subr.bf16.mxu0 0
    %1529 = vmatpush2.bf16.msra.mxu0 0
    %1530 = vmatprep.subr.bf16.mxu0 0
    %1531 = vmatpush2.bf16.msra.mxu0 0
    %1532 = vmatprep.subr.bf16.mxu0 0
    %1533 = vmatpush2.bf16.msra.mxu0 0
    %1534 = vmatprep.subr.bf16.mxu0 0
    %1535 = vmatpush2.bf16.msra.mxu0 0
    %1536 = vmatprep.subr.bf16.mxu0 0
    %1537 = vmatpush2.bf16.msra.mxu0 0
    %1538 = vmatprep.mubr.bf16.mxu0 0
    %1539 = vmatmul.mubr.bf16.gmra.mxu0 %v1504
    %v1540 = vpop.f32.mrf.mxu0
    %v1541 = vadd.f32 0.0, %v1540
    %v1542 = vpop.f32.mrf.mxu0
    %v1543 = vpop.f32.mrf.mxu0
    %v1544 = vpop.f32.mrf.mxu0
    %1545 = vdwg.mxu0
    %v1546 = vadd.f32 %v1498, %v1541
    %v1547 = vxor.u32 %v1546, 2147483648
    %v1548 = vmul.f32 %v1547, 1.442695
    %v1549 = vpow.pop %v1548
    %v1550 = vadd.f32 %v1549, 1.0
    %v1551 = vrcp.pop %v1550
    %v1552 = vmul.f32 1.0, %v1551
    %v1553 = vtanh.pop %v1546
    %v1554 = vmul.f32 %v1552, %v1491
    %1556 = vrot.lane.b32.xlu0 %v1553, 64
    %v1557 = vpop.permute.xlu0 %1556
    %v1559 = vmul.f32 %v1552, %v1557
    %1561 = vrot.lane.b32.xlu0 %v1559, 32
    %v1562 = vpop.permute.xlu0 %1561
    %v1564 = vadd.f32 %v1554, %v1562
    %v1565 = vtanh.pop %v1564
    %1567 = vrot.lane.b32.xlu0 %v1565, 64
    %v1568 = vpop.permute.xlu0 %1567
    %v1570 = vmul.f32 %v1552, %v1568
    %v1571 = vld [vmem:[%s851] sm:$0xff]
    %v1572 = vpack.c.bf16 %v1570, %v1570
    %1574 = vrot.lane.b32.xlu0 %v1572, 32
    %v1575 = vpop.permute.xlu0 %1574
    %v1577 = vsel %vm297, %v1575, 0
    %1579 = vmatprep.subr.bf16.mxu0 0
    %1580 = vmatpush1.bf16.msra.mxu0 0
    %1581 = vmatprep.subr.bf16.mxu0 0
    %1582 = vmatpush1.bf16.msra.mxu0 0
    %1583 = vmatprep.subr.bf16.mxu0 0
    %1584 = vmatpush1.bf16.msra.mxu0 0
    %1585 = vmatprep.subr.bf16.mxu0 0
    %1586 = vmatpush1.bf16.msra.mxu0 0
    %1587 = vmatprep.subr.bf16.mxu0 0
    %1588 = vmatpush1.bf16.msra.mxu0 0
    %1589 = vmatprep.subr.bf16.mxu0 0
    %1590 = vmatpush1.bf16.msra.mxu0 0
    %1591 = vmatprep.subr.bf16.mxu0 0
    %1592 = vmatpush1.bf16.msra.mxu0 %v1065
    %1593 = vmatprep.subr.bf16.mxu0 0
    %1594 = vmatpush1.bf16.msra.mxu0 %v1064
    %1595 = vmatprep.subr.bf16.mxu0 0
    %1596 = vmatpush2.bf16.msra.mxu0 0
    %1597 = vmatprep.subr.bf16.mxu0 0
    %1598 = vmatpush2.bf16.msra.mxu0 0
    %1599 = vmatprep.subr.bf16.mxu0 0
    %1600 = vmatpush2.bf16.msra.mxu0 0
    %1601 = vmatprep.subr.bf16.mxu0 0
    %1602 = vmatpush2.bf16.msra.mxu0 0
    %1603 = vmatprep.subr.bf16.mxu0 0
    %1604 = vmatpush2.bf16.msra.mxu0 0
    %1605 = vmatprep.subr.bf16.mxu0 0
    %1606 = vmatpush2.bf16.msra.mxu0 0
    %1607 = vmatprep.subr.bf16.mxu0 0
    %1608 = vmatpush2.bf16.msra.mxu0 0
    %1609 = vmatprep.subr.bf16.mxu0 0
    %1610 = vmatpush2.bf16.msra.mxu0 0
    %1611 = vmatprep.mubr.bf16.mxu0 0
    %1612 = vmatmul.mubr.bf16.gmra.mxu0 %v1577
    %v1613 = vpop.f32.mrf.mxu0
    %v1614 = vadd.f32 0.0, %v1613
    %v1615 = vpop.f32.mrf.mxu0
    %v1616 = vpop.f32.mrf.mxu0
    %v1617 = vpop.f32.mrf.mxu0
    %1618 = vdwg.mxu0
    %v1619 = vadd.f32 %v1571, %v1614
    %v1620 = vxor.u32 %v1619, 2147483648
    %v1621 = vmul.f32 %v1620, 1.442695
    %v1622 = vpow.pop %v1621
    %v1623 = vadd.f32 %v1622, 1.0
    %v1624 = vrcp.pop %v1623
    %v1625 = vmul.f32 1.0, %v1624
    %v1626 = vtanh.pop %v1619
    %v1627 = vmul.f32 %v1625, %v1564
    %1629 = vrot.lane.b32.xlu0 %v1626, 64
    %v1630 = vpop.permute.xlu0 %1629
    %v1632 = vmul.f32 %v1625, %v1630
    %1634 = vrot.lane.b32.xlu0 %v1632, 32
    %v1635 = vpop.permute.xlu0 %1634
    %v1637 = vadd.f32 %v1627, %v1635
    %v1638 = vtanh.pop %v1637
    %1640 = vrot.lane.b32.xlu0 %v1638, 64
    %v1641 = vpop.permute.xlu0 %1640
    %v1643 = vmul.f32 %v1625, %v1641
    %v1644 = vpack.c.bf16 %v1643, %v1643
    %v1645 = vld [vmem:[%s7] sm:$0xf]
    %v1646 = vld [vmem:[%s7 + $0x4] sm:$0xf]
    %v1647 = vld [vmem:[%s7 + $0x8] sm:$0xf]
    %v1648 = vld [vmem:[%s7 + $0xc] sm:$0xf]
    %v1649 = vld [vmem:[%s8] sm:$0x1]
    %v1651 = vlaneseq
    %v1652 = vshrl.u32 %v1651, 7
    %v1653 = vsub.s32 0, %v1652
    %v1654 = vrot.slane %v1649, %v1653
    %1657 = vrot.lane.b32.xlu0 %v1644, 32
    %v1658 = vpop.permute.xlu0 %1657
    %v1663 = vunpack.c.l.b16 %v1645
    %v1664 = vunpack.c.l.b16 %v1646
    %v1665 = vunpack.c.l.b16 %v1647
    %v1666 = vunpack.c.l.b16 %v1648
    %v1667 = vpack.c.b16 %v1664, %v1663
    %v1668 = vpack.c.b16 %v1666, %v1665
    %v1672 = vsel %vm297, %v1658, 0
    %1674 = vmatprep.subr.bf16.mxu0 0
    %1675 = vmatpush1.bf16.msra.mxu0 0
    %1676 = vmatprep.subr.bf16.mxu0 0
    %1677 = vmatpush1.bf16.msra.mxu0 0
    %1678 = vmatprep.subr.bf16.mxu0 0
    %1679 = vmatpush1.bf16.msra.mxu0 0
    %1680 = vmatprep.subr.bf16.mxu0 0
    %1681 = vmatpush1.bf16.msra.mxu0 0
    %1682 = vmatprep.subr.bf16.mxu0 0
    %1683 = vmatpush1.bf16.msra.mxu0 0
    %1684 = vmatprep.subr.bf16.mxu0 0
    %1685 = vmatpush1.bf16.msra.mxu0 0
    %1686 = vmatprep.subr.bf16.mxu0 0
    %1687 = vmatpush1.bf16.msra.mxu0 %v1668
    %1688 = vmatprep.subr.bf16.mxu0 0
    %1689 = vmatpush1.bf16.msra.mxu0 %v1667
    %1690 = vmatprep.subr.bf16.mxu0 0
    %1691 = vmatpush2.bf16.msra.mxu0 0
    %1692 = vmatprep.subr.bf16.mxu0 0
    %1693 = vmatpush2.bf16.msra.mxu0 0
    %1694 = vmatprep.subr.bf16.mxu0 0
    %1695 = vmatpush2.bf16.msra.mxu0 0
    %1696 = vmatprep.subr.bf16.mxu0 0
    %1697 = vmatpush2.bf16.msra.mxu0 0
    %1698 = vmatprep.subr.bf16.mxu0 0
    %1699 = vmatpush2.bf16.msra.mxu0 0
    %1700 = vmatprep.subr.bf16.mxu0 0
    %1701 = vmatpush2.bf16.msra.mxu0 0
    %1702 = vmatprep.subr.bf16.mxu0 0
    %1703 = vmatpush2.bf16.msra.mxu0 0
    %1704 = vmatprep.subr.bf16.mxu0 0
    %1705 = vmatpush2.bf16.msra.mxu0 0
    %1706 = vmatprep.mubr.bf16.mxu0 0
    %1707 = vmatmul.mubr.bf16.gmra.mxu0 %v1672
    %v1708 = vpop.f32.mrf.mxu0
    %v1709 = vadd.f32 %v1654, %v1708
    %v1710 = vpop.f32.mrf.mxu0
    %v1711 = vpop.f32.mrf.mxu0
    %v1712 = vpop.f32.mrf.mxu0
    %1713 = vdwg.mxu0
    %1714 = vst [vmem:[#allocation4] sm:$0xff] %v1709
    // Predicated region
    $region38: #{tpu_custom_call.1} parent=1 // pred_check
      _
    $region39: #{tpu_custom_call.1} parent=1 // pred_check_branch
      %1716 = sbr.rel (0) target = $region41
    $region40: #{tpu_custom_call.1} parent=1 // pred_region
      %s1718 = ssub.s32 128, 128
      %1719 = vsyncadd [#allocation5], %s1718
      %s1721 = sshll.u32 [#allocation4], 4
      %s1722 = int_to_ptr.vmem [resolvable:$true] %s1721
      %1724 = dma.vmem_to_hbm [thread:$0]  %s1722, 128, %s9, [#allocation5]
    $region41: #{tpu_custom_call.1} parent=1 // pred_fallthru
      _
    // Predicated region
    $region42: #{tpu_custom_call.1} parent=1 // pred_check
      _
    $region43: #{tpu_custom_call.1} parent=1 // pred_check_branch
      %1726 = sbr.rel (0) target = $region45
    $region44: #{tpu_custom_call.1} parent=1 // pred_region
      %1727 = dma.done [#allocation5], 128
    $region45: #{tpu_custom_call.1} parent=1 // pred_fallthru
      _
    %1728 = vsyncpa [#allocation5], 1

</llo_original>
